<compile_context>
chip_gen: v6e
topology: v6e:2x2x1
jax: 0.10.0
libtpu: 0.0.40
codegen_flags: <defaults>
</compile_context>

<pallas_src>
import math

import jax
import jax.numpy as jnp
from jax.experimental import pallas as pl
from jax.experimental.pallas import tpu as pltpu

# ---- model hyper-parameters (small, consistent with the module) -------------
# (num_heads reduced 64 -> 4 so head_dim = 16 is lane/MXU friendly;
#  ff_dim reduced 1024 -> 128 to keep the demo small.)
NUM_SEQ = 2        # independent sequences -> "parallel" grid axis (v7x 2nd TC)
BATCH = 8          # rows per sequence == attention sequence length (L=B, N=1)
INPUT_DIM = 16
EMBED_DIM = 64
NUM_HEADS = 4
HEAD_DIM = EMBED_DIM // NUM_HEADS
FF_DIM = 128
NUM_CLASSES = 6
OUT_PAD = 128      # lane-dense classifier output width (sliced outside)
LN_EPS = 1e-5

# ---- packed weight-slab row offsets (all multiples of 8) ---------------------
W_COLS = 3 * EMBED_DIM                 # 192
WQKV_ROW = 0                           # fused We^T @ Win^T : (D_in, 3E)
WEMB_ROW = WQKV_ROW + INPUT_DIM        # We^T              : (D_in, E)
WO_ROW = WEMB_ROW + INPUT_DIM          # Wo^T              : (E, E)
W1_ROW = WO_ROW + EMBED_DIM            # W1^T              : (E, FF)
W2_ROW = W1_ROW + EMBED_DIM            # W2^T              : (FF, E)
WC_ROW = W2_ROW + FF_DIM               # Wc^T (zero-padded): (E, OUT_PAD)
W_ROWS = WC_ROW + EMBED_DIM            # = 352

# ---- packed bias/LN slab rows (width = 3*E = 192) ----------------------------
(BQKV_ROW, BE_ROW, BO_ROW, G1_ROW, BT1_ROW,
 B1_ROW, B2_ROW, G2_ROW, BT2_ROW, BC_ROW) = range(10)
BIAS_ROWS = 10
BIAS_COLS = 3 * EMBED_DIM


def _layernorm(x, gamma, beta):
    # PyTorch LayerNorm: biased variance over the last dim, eps inside sqrt.
    mean = jnp.mean(x, axis=-1, keepdims=True)
    xc = x - mean
    var = jnp.mean(xc * xc, axis=-1, keepdims=True)
    return xc * jax.lax.rsqrt(var + LN_EPS) * gamma + beta


def _tree_sum(xs):
    """Balanced-tree sum (breaks serial accumulation dependency chains)."""
    xs = list(xs)
    while len(xs) > 1:
        nxt = [xs[i] + xs[i + 1] for i in range(0, len(xs) - 1, 2)]
        if len(xs) % 2:
            nxt.append(xs[-1])
        xs = nxt
    return xs[0]


def transformer_kernel(
    x_ref,        # (1, B, D_in)            one independent sequence
    wslab_ref,    # (W_ROWS, W_COLS)        packed {wqkv_fused, wemb, wo, w1, w2, wc}
    bias_ref,     # (BIAS_ROWS, BIAS_COLS)  packed bias / LN rows
    out_ref,      # (1, B, OUT_PAD)
):
    x = x_ref[0].astype(jnp.float32)                       # (B, D_in)
    B = x.shape[0]

    # ---- bias / LN rows (static slices of the packed slab) ------------------
    bqkv = bias_ref[BQKV_ROW:BQKV_ROW + 1, 0:3 * EMBED_DIM]
    be = bias_ref[BE_ROW:BE_ROW + 1, 0:EMBED_DIM]
    bo = bias_ref[BO_ROW:BO_ROW + 1, 0:EMBED_DIM]
    g1 = bias_ref[G1_ROW:G1_ROW + 1, 0:EMBED_DIM]
    bt1 = bias_ref[BT1_ROW:BT1_ROW + 1, 0:EMBED_DIM]
    b1 = bias_ref[B1_ROW:B1_ROW + 1, 0:FF_DIM]
    b2 = bias_ref[B2_ROW:B2_ROW + 1, 0:EMBED_DIM]
    g2 = bias_ref[G2_ROW:G2_ROW + 1, 0:EMBED_DIM]
    bt2 = bias_ref[BT2_ROW:BT2_ROW + 1, 0:EMBED_DIM]
    bc = bias_ref[BC_ROW:BC_ROW + 1, 0:OUT_PAD]

    wqkv = wslab_ref[WQKV_ROW:WQKV_ROW + INPUT_DIM, 0:3 * EMBED_DIM]
    wemb = wslab_ref[WEMB_ROW:WEMB_ROW + INPUT_DIM, 0:EMBED_DIM]

    # ---- embedding and fused QKV: both depend only on x (independent pushes) -
    h = jnp.dot(x, wemb, preferred_element_type=jnp.float32) + be        # (B, E)
    qkv = jnp.dot(x, wqkv, preferred_element_type=jnp.float32) + bqkv    # (B, 3E)

    scale = 1.0 / math.sqrt(HEAD_DIM)

    # ---- per-head score tiles: NT dot_general, no k transposes ---------------
    s_tiles = []
    for hd in range(NUM_HEADS):
        q_h = qkv[:, hd * HEAD_DIM:(hd + 1) * HEAD_DIM]
        k_h = qkv[:, EMBED_DIM + hd * HEAD_DIM:EMBED_DIM + (hd + 1) * HEAD_DIM]
        s_tiles.append(jax.lax.dot_general(
            q_h, k_h, dimension_numbers=(((1,), (1,)), ((), ())),
            preferred_element_type=jnp.float32))                         # (B, B)

    # ---- one batched softmax for all heads: (H*B, B) -------------------------
    s_all = jnp.concatenate(s_tiles, axis=0) * scale
    s_all = s_all - jnp.max(s_all, axis=-1, keepdims=True)
    p_all = jnp.exp(s_all)
    p_all = p_all * pl.reciprocal(jnp.sum(p_all, axis=-1, keepdims=True),
                                  approx=True)

    # ---- per-head attention output + folded out_proj; balanced-tree sum ------
    partials = []
    for hd in range(NUM_HEADS):
        p_h = p_all[hd * B:(hd + 1) * B, :]
        v_h = qkv[:, 2 * EMBED_DIM + hd * HEAD_DIM:
                  2 * EMBED_DIM + (hd + 1) * HEAD_DIM]
        o_h = jnp.dot(p_h, v_h, preferred_element_type=jnp.float32)      # (B, Dh)
        wo_h = wslab_ref[WO_ROW + hd * HEAD_DIM:WO_ROW + (hd + 1) * HEAD_DIM,
                         0:EMBED_DIM]                                    # (Dh, E)
        partials.append(jnp.dot(o_h, wo_h, preferred_element_type=jnp.float32))
    attn = _tree_sum(partials) + bo

    # ---- residual + LayerNorm 1 ----------------------------------------------
    y = _layernorm(h + attn, g1, bt1)

    # ---- FFN: Linear -> ReLU -> Linear ---------------------------------------
    w1 = wslab_ref[W1_ROW:W1_ROW + EMBED_DIM, 0:FF_DIM]
    f = jnp.maximum(jnp.dot(y, w1, preferred_element_type=jnp.float32) + b1, 0.0)
    w2 = wslab_ref[W2_ROW:W2_ROW + FF_DIM, 0:EMBED_DIM]
    f = jnp.dot(f, w2, preferred_element_type=jnp.float32) + b2

    # ---- residual + LayerNorm 2 ----------------------------------------------
    z = _layernorm(y + f, g2, bt2)

    # ---- global pool over the length-1 axis is an identity -------------------
    # ---- dropout (eval: identity) + classifier (lane-dense padded output) ----
    wc = wslab_ref[WC_ROW:WC_ROW + EMBED_DIM, 0:OUT_PAD]
    out_ref[0] = jnp.dot(z, wc, preferred_element_type=jnp.float32) + bc


def transformer_forward(x, packed):
    """x: (G, B, D_in) — G independent sequences, each a full module forward."""
    wslab, bias = packed
    G = x.shape[0]
    out = pl.pallas_call(
        transformer_kernel,
        out_shape=jax.ShapeDtypeStruct((G, BATCH, OUT_PAD), jnp.float32),
        grid=(G,),
        in_specs=[
            pl.BlockSpec((1, BATCH, INPUT_DIM), lambda g: (g, 0, 0)),
            pl.BlockSpec((W_ROWS, W_COLS), lambda g: (0, 0)),        # resident
            pl.BlockSpec((BIAS_ROWS, BIAS_COLS), lambda g: (0, 0)),  # resident
        ],
        out_specs=pl.BlockSpec((1, BATCH, OUT_PAD), lambda g: (g, 0, 0)),
        compiler_params=pltpu.CompilerParams(
            dimension_semantics=("parallel",)),
    )(x, wslab, bias)
    return out[:, :, :NUM_CLASSES]


def init_raw_params(key):
    """Deterministic parameter init in PyTorch layouts."""
    ks = jax.random.split(key, 12)

    def unif(k, shape, fan_in):
        bound = 1.0 / math.sqrt(fan_in)
        return jax.random.uniform(k, shape, jnp.float32, -bound, bound)

    return dict(
        we=unif(ks[0], (EMBED_DIM, INPUT_DIM), INPUT_DIM),
        be=unif(ks[1], (EMBED_DIM,), INPUT_DIM),
        w_in=unif(ks[2], (3 * EMBED_DIM, EMBED_DIM), EMBED_DIM),
        b_in=unif(ks[3], (3 * EMBED_DIM,), EMBED_DIM),
        wo=unif(ks[4], (EMBED_DIM, EMBED_DIM), EMBED_DIM),
        bo=unif(ks[5], (EMBED_DIM,), EMBED_DIM),
        g1=jnp.ones((EMBED_DIM,), jnp.float32),
        bt1=jnp.zeros((EMBED_DIM,), jnp.float32),
        g2=jnp.ones((EMBED_DIM,), jnp.float32),
        bt2=jnp.zeros((EMBED_DIM,), jnp.float32),
        w1=unif(ks[6], (FF_DIM, EMBED_DIM), EMBED_DIM),
        b1=unif(ks[7], (FF_DIM,), EMBED_DIM),
        w2=unif(ks[8], (EMBED_DIM, FF_DIM), FF_DIM),
        b2=unif(ks[9], (EMBED_DIM,), FF_DIM),
        wc=unif(ks[10], (NUM_CLASSES, EMBED_DIM), EMBED_DIM),
        bc=unif(ks[11], (NUM_CLASSES,), EMBED_DIM),
    )


def pack_params(p):
    """Pre-transpose, pre-fuse (emb->QKV), and pack into two lane-friendly slabs."""
    wemb_t = p["we"].T                                # (D_in, E)
    win_t = p["w_in"].T                               # (E, 3E), columns [q | k | v]
    wqkv_fused = wemb_t @ win_t                       # (D_in, 3E)
    bqkv_fused = p["be"] @ win_t + p["b_in"]          # (3E,)

    wslab = jnp.zeros((W_ROWS, W_COLS), jnp.float32)
    wslab = wslab.at[WQKV_ROW:WQKV_ROW + INPUT_DIM, 0:3 * EMBED_DIM].set(wqkv_fused)
    wslab = wslab.at[WEMB_ROW:WEMB_ROW + INPUT_DIM, 0:EMBED_DIM].set(wemb_t)
    wslab = wslab.at[WO_ROW:WO_ROW + EMBED_DIM, 0:EMBED_DIM].set(p["wo"].T)
    wslab = wslab.at[W1_ROW:W1_ROW + EMBED_DIM, 0:FF_DIM].set(p["w1"].T)
    wslab = wslab.at[W2_ROW:W2_ROW + FF_DIM, 0:EMBED_DIM].set(p["w2"].T)
    wslab = wslab.at[WC_ROW:WC_ROW + EMBED_DIM, 0:NUM_CLASSES].set(p["wc"].T)

    bias = jnp.zeros((BIAS_ROWS, BIAS_COLS), jnp.float32)
    bias = bias.at[BQKV_ROW, 0:3 * EMBED_DIM].set(bqkv_fused)
    bias = bias.at[BE_ROW, 0:EMBED_DIM].set(p["be"])
    bias = bias.at[BO_ROW, 0:EMBED_DIM].set(p["bo"])
    bias = bias.at[G1_ROW, 0:EMBED_DIM].set(p["g1"])
    bias = bias.at[BT1_ROW, 0:EMBED_DIM].set(p["bt1"])
    bias = bias.at[B1_ROW, 0:FF_DIM].set(p["b1"])
    bias = bias.at[B2_ROW, 0:EMBED_DIM].set(p["b2"])
    bias = bias.at[G2_ROW, 0:EMBED_DIM].set(p["g2"])
    bias = bias.at[BT2_ROW, 0:EMBED_DIM].set(p["bt2"])
    bias = bias.at[BC_ROW, 0:NUM_CLASSES].set(p["bc"])

    return (wslab, bias)


def reference_forward(x, p):
    """Pure-JAX reference mirroring the PyTorch forward (eval mode), raw params."""
    h = x @ p["we"].T + p["be"]
    wq, wk, wv = jnp.split(p["w_in"], 3, axis=0)
    bq, bk, bv = jnp.split(p["b_in"], 3)
    q, k, v = h @ wq.T + bq, h @ wk.T + bk, h @ wv.T + bv
    B = x.shape[0]
    qh = q.reshape(B, NUM_HEADS, HEAD_DIM)
    kh = k.reshape(B, NUM_HEADS, HEAD_DIM)
    vh = v.reshape(B, NUM_HEADS, HEAD_DIM)
    s = jnp.einsum("qhd,khd->hqk", qh, kh) / math.sqrt(HEAD_DIM)
    pr = jax.nn.softmax(s, axis=-1)
    o = jnp.einsum("hqk,khd->qhd", pr, vh).reshape(B, EMBED_DIM)
    attn = o @ p["wo"].T + p["bo"]

    def ln(u, g, b):
        m = u.mean(-1, keepdims=True)
        va = ((u - m) ** 2).mean(-1, keepdims=True)
        return (u - m) / jnp.sqrt(va + LN_EPS) * g + b

    y = ln(h + attn, p["g1"], p["bt1"])
    f = jnp.maximum(y @ p["w1"].T + p["b1"], 0.0) @ p["w2"].T + p["b2"]
    z = ln(y + f, p["g2"], p["bt2"])
    return z @ p["wc"].T + p["bc"]


if __name__ == "__main__":
    key = jax.random.PRNGKey(0)
    kx, kp = jax.random.split(key)
    x = jax.random.normal(kx, (NUM_SEQ, BATCH, INPUT_DIM), jnp.float32)
    raw = init_raw_params(kp)
    packed = pack_params(raw)

    run = jax.jit(transformer_forward)
    out = run(x, packed)
    jax.block_until_ready(out)

    ref = jax.vmap(lambda xi: reference_forward(xi, raw))(x)
    assert out.shape == (NUM_SEQ, BATCH, NUM_CLASSES), out.shape
    err = jnp.max(jnp.abs(out - ref))
    assert jnp.allclose(out, ref, atol=2e-3, rtol=2e-3), f"max abs err {err}"
    print("KERNEL_OK")
</pallas_src>

<mosaic_0001>
module attributes {stable_mosaic.version = 11 : i64} {
  func.func @transformer_kernel(%arg0: i32, %arg1: memref<1x8x16xf32, #tpu.memory_space<vmem>>, %arg2: memref<352x192xf32, #tpu.memory_space<vmem>>, %arg3: memref<10x192xf32, #tpu.memory_space<vmem>>, %arg4: memref<1x8x128xf32, #tpu.memory_space<vmem>>) attributes {dimension_semantics = [#tpu.dimension_semantics<parallel>], iteration_bounds = array<i64: 2>, scalar_prefetch = 0 : i64, scratch_operands = 0 : i64, tpu.core_type = #tpu.core_type<tc>, window_params = [{transform_indices = @transform_0, window_bounds = array<i64: 1, 8, 16>}, {pipeline_mode = #tpu.pipeline_mode<synchronous>, transform_indices = @transform_1, window_bounds = array<i64: 352, 192>}, {pipeline_mode = #tpu.pipeline_mode<synchronous>, transform_indices = @transform_2, window_bounds = array<i64: 10, 192>}, {transform_indices = @transform_3, window_bounds = array<i64: 1, 8, 128>}]} {
    %c0 = arith.constant 0 : index
    %c0_0 = arith.constant 0 : index
    %c0_1 = arith.constant 0 : index
    %0 = vector.load %arg1[%c0, %c0_0, %c0_1] : memref<1x8x16xf32, #tpu.memory_space<vmem>>, vector<1x8x16xf32>
    %1 = vector.shape_cast %0 : vector<1x8x16xf32> to vector<8x16xf32>
    %c0_2 = arith.constant 0 : index
    %c0_3 = arith.constant 0 : index
    %2 = vector.load %arg3[%c0_2, %c0_3] : memref<10x192xf32, #tpu.memory_space<vmem>>, vector<1x192xf32>
    %c1 = arith.constant 1 : index
    %c0_4 = arith.constant 0 : index
    %3 = vector.load %arg3[%c1, %c0_4] : memref<10x192xf32, #tpu.memory_space<vmem>>, vector<1x64xf32>
    %c2 = arith.constant 2 : index
    %c0_5 = arith.constant 0 : index
    %4 = vector.load %arg3[%c2, %c0_5] : memref<10x192xf32, #tpu.memory_space<vmem>>, vector<1x64xf32>
    %c3 = arith.constant 3 : index
    %c0_6 = arith.constant 0 : index
    %5 = vector.load %arg3[%c3, %c0_6] : memref<10x192xf32, #tpu.memory_space<vmem>>, vector<1x64xf32>
    %c4 = arith.constant 4 : index
    %c0_7 = arith.constant 0 : index
    %6 = vector.load %arg3[%c4, %c0_7] : memref<10x192xf32, #tpu.memory_space<vmem>>, vector<1x64xf32>
    %c5 = arith.constant 5 : index
    %c0_8 = arith.constant 0 : index
    %7 = vector.load %arg3[%c5, %c0_8] : memref<10x192xf32, #tpu.memory_space<vmem>>, vector<1x128xf32>
    %c6 = arith.constant 6 : index
    %c0_9 = arith.constant 0 : index
    %8 = vector.load %arg3[%c6, %c0_9] : memref<10x192xf32, #tpu.memory_space<vmem>>, vector<1x64xf32>
    %c7 = arith.constant 7 : index
    %c0_10 = arith.constant 0 : index
    %9 = vector.load %arg3[%c7, %c0_10] : memref<10x192xf32, #tpu.memory_space<vmem>>, vector<1x64xf32>
    %c8 = arith.constant 8 : index
    %c0_11 = arith.constant 0 : index
    %10 = vector.load %arg3[%c8, %c0_11] : memref<10x192xf32, #tpu.memory_space<vmem>>, vector<1x64xf32>
    %c9 = arith.constant 9 : index
    %c0_12 = arith.constant 0 : index
    %11 = vector.load %arg3[%c9, %c0_12] : memref<10x192xf32, #tpu.memory_space<vmem>>, vector<1x128xf32>
    %c0_13 = arith.constant 0 : index
    %c0_14 = arith.constant 0 : index
    %12 = vector.load %arg2[%c0_13, %c0_14] : memref<352x192xf32, #tpu.memory_space<vmem>>, vector<16x192xf32>
    %c16 = arith.constant 16 : index
    %c0_15 = arith.constant 0 : index
    %13 = vector.load %arg2[%c16, %c0_15] : memref<352x192xf32, #tpu.memory_space<vmem>>, vector<16x64xf32>
    %cst = arith.constant dense<0.000000e+00> : vector<8x64xf32>
    %14 = tpu.matmul %1, %13, %cst {dimension_numbers = #tpu.dot_dimension_numbers<[1], [0], [0], [1], [0, 0, 1, 1], [], []>} : vector<8x16xf32>, vector<16x64xf32>, vector<8x64xf32> -> vector<8x64xf32>
    %15 = vector.broadcast %3 : vector<1x64xf32> to vector<8x64xf32>
    %16 = arith.addf %14, %15 : vector<8x64xf32>
    %cst_16 = arith.constant dense<0.000000e+00> : vector<8x192xf32>
    %17 = tpu.matmul %1, %12, %cst_16 {dimension_numbers = #tpu.dot_dimension_numbers<[1], [0], [0], [1], [0, 0, 1, 1], [], []>} : vector<8x16xf32>, vector<16x192xf32>, vector<8x192xf32> -> vector<8x192xf32>
    %18 = vector.broadcast %2 : vector<1x192xf32> to vector<8x192xf32>
    %19 = arith.addf %17, %18 : vector<8x192xf32>
    %20 = vector.extract_strided_slice %19 {offsets = [0, 0], sizes = [8, 16], strides = [1, 1]} : vector<8x192xf32> to vector<8x16xf32>
    %21 = vector.extract_strided_slice %19 {offsets = [0, 64], sizes = [8, 16], strides = [1, 1]} : vector<8x192xf32> to vector<8x16xf32>
    %cst_17 = arith.constant dense<0.000000e+00> : vector<8x8xf32>
    %22 = tpu.matmul %20, %21, %cst_17 {dimension_numbers = #tpu.dot_dimension_numbers<[1], [1], [0], [0], [0, 0, 1, 0], [], []>} : vector<8x16xf32>, vector<8x16xf32>, vector<8x8xf32> -> vector<8x8xf32>
    %23 = vector.extract_strided_slice %19 {offsets = [0, 16], sizes = [8, 16], strides = [1, 1]} : vector<8x192xf32> to vector<8x16xf32>
    %24 = vector.extract_strided_slice %19 {offsets = [0, 80], sizes = [8, 16], strides = [1, 1]} : vector<8x192xf32> to vector<8x16xf32>
    %cst_18 = arith.constant dense<0.000000e+00> : vector<8x8xf32>
    %25 = tpu.matmul %23, %24, %cst_18 {dimension_numbers = #tpu.dot_dimension_numbers<[1], [1], [0], [0], [0, 0, 1, 0], [], []>} : vector<8x16xf32>, vector<8x16xf32>, vector<8x8xf32> -> vector<8x8xf32>
    %26 = vector.extract_strided_slice %19 {offsets = [0, 32], sizes = [8, 16], strides = [1, 1]} : vector<8x192xf32> to vector<8x16xf32>
    %27 = vector.extract_strided_slice %19 {offsets = [0, 96], sizes = [8, 16], strides = [1, 1]} : vector<8x192xf32> to vector<8x16xf32>
    %cst_19 = arith.constant dense<0.000000e+00> : vector<8x8xf32>
    %28 = tpu.matmul %26, %27, %cst_19 {dimension_numbers = #tpu.dot_dimension_numbers<[1], [1], [0], [0], [0, 0, 1, 0], [], []>} : vector<8x16xf32>, vector<8x16xf32>, vector<8x8xf32> -> vector<8x8xf32>
    %29 = vector.extract_strided_slice %19 {offsets = [0, 48], sizes = [8, 16], strides = [1, 1]} : vector<8x192xf32> to vector<8x16xf32>
    %30 = vector.extract_strided_slice %19 {offsets = [0, 112], sizes = [8, 16], strides = [1, 1]} : vector<8x192xf32> to vector<8x16xf32>
    %cst_20 = arith.constant dense<0.000000e+00> : vector<8x8xf32>
    %31 = tpu.matmul %29, %30, %cst_20 {dimension_numbers = #tpu.dot_dimension_numbers<[1], [1], [0], [0], [0, 0, 1, 0], [], []>} : vector<8x16xf32>, vector<8x16xf32>, vector<8x8xf32> -> vector<8x8xf32>
    %32 = tpu.concatenate %22, %25, %28, %31 in 0 : vector<8x8xf32>, vector<8x8xf32>, vector<8x8xf32>, vector<8x8xf32> -> vector<32x8xf32>
    %cst_21 = arith.constant 2.500000e-01 : f32
    %33 = vector.broadcast %cst_21 : f32 to vector<32x8xf32>
    %34 = arith.mulf %32, %33 : vector<32x8xf32>
    %cst_22 = arith.constant dense<0xFF800000> : vector<32xf32>
    %35 = vector.multi_reduction <maximumf>, %34, %cst_22 [1] : vector<32x8xf32> to vector<32xf32>
    %36 = vector.shape_cast %35 : vector<32xf32> to vector<32x1xf32>
    %37 = vector.broadcast %36 : vector<32x1xf32> to vector<32x8xf32>
    %38 = arith.subf %34, %37 : vector<32x8xf32>
    %39 = math.exp %38 : vector<32x8xf32>
    %cst_23 = arith.constant dense<0.000000e+00> : vector<32xf32>
    %40 = vector.multi_reduction <add>, %39, %cst_23 [1] : vector<32x8xf32> to vector<32xf32>
    %41 = vector.shape_cast %40 : vector<32xf32> to vector<32x1xf32>
    %42 = tpu.reciprocal %41 {approx = true} : vector<32x1xf32> -> vector<32x1xf32>
    %43 = vector.broadcast %42 : vector<32x1xf32> to vector<32x8xf32>
    %44 = arith.mulf %39, %43 : vector<32x8xf32>
    %45 = vector.extract_strided_slice %44 {offsets = [0, 0], sizes = [8, 8], strides = [1, 1]} : vector<32x8xf32> to vector<8x8xf32>
    %46 = vector.extract_strided_slice %19 {offsets = [0, 128], sizes = [8, 16], strides = [1, 1]} : vector<8x192xf32> to vector<8x16xf32>
    %cst_24 = arith.constant dense<0.000000e+00> : vector<8x16xf32>
    %47 = tpu.matmul %45, %46, %cst_24 {dimension_numbers = #tpu.dot_dimension_numbers<[1], [0], [0], [1], [0, 0, 1, 1], [], []>} : vector<8x8xf32>, vector<8x16xf32>, vector<8x16xf32> -> vector<8x16xf32>
    %c32 = arith.constant 32 : index
    %c0_25 = arith.constant 0 : index
    %48 = vector.load %arg2[%c32, %c0_25] : memref<352x192xf32, #tpu.memory_space<vmem>>, vector<16x64xf32>
    %cst_26 = arith.constant dense<0.000000e+00> : vector<8x64xf32>
    %49 = tpu.matmul %47, %48, %cst_26 {dimension_numbers = #tpu.dot_dimension_numbers<[1], [0], [0], [1], [0, 0, 1, 1], [], []>} : vector<8x16xf32>, vector<16x64xf32>, vector<8x64xf32> -> vector<8x64xf32>
    %50 = vector.extract_strided_slice %44 {offsets = [8, 0], sizes = [8, 8], strides = [1, 1]} : vector<32x8xf32> to vector<8x8xf32>
    %51 = vector.extract_strided_slice %19 {offsets = [0, 144], sizes = [8, 16], strides = [1, 1]} : vector<8x192xf32> to vector<8x16xf32>
    %cst_27 = arith.constant dense<0.000000e+00> : vector<8x16xf32>
    %52 = tpu.matmul %50, %51, %cst_27 {dimension_numbers = #tpu.dot_dimension_numbers<[1], [0], [0], [1], [0, 0, 1, 1], [], []>} : vector<8x8xf32>, vector<8x16xf32>, vector<8x16xf32> -> vector<8x16xf32>
    %c48 = arith.constant 48 : index
    %c0_28 = arith.constant 0 : index
    %53 = vector.load %arg2[%c48, %c0_28] : memref<352x192xf32, #tpu.memory_space<vmem>>, vector<16x64xf32>
    %cst_29 = arith.constant dense<0.000000e+00> : vector<8x64xf32>
    %54 = tpu.matmul %52, %53, %cst_29 {dimension_numbers = #tpu.dot_dimension_numbers<[1], [0], [0], [1], [0, 0, 1, 1], [], []>} : vector<8x16xf32>, vector<16x64xf32>, vector<8x64xf32> -> vector<8x64xf32>
    %55 = vector.extract_strided_slice %44 {offsets = [16, 0], sizes = [8, 8], strides = [1, 1]} : vector<32x8xf32> to vector<8x8xf32>
    %56 = vector.extract_strided_slice %19 {offsets = [0, 160], sizes = [8, 16], strides = [1, 1]} : vector<8x192xf32> to vector<8x16xf32>
    %cst_30 = arith.constant dense<0.000000e+00> : vector<8x16xf32>
    %57 = tpu.matmul %55, %56, %cst_30 {dimension_numbers = #tpu.dot_dimension_numbers<[1], [0], [0], [1], [0, 0, 1, 1], [], []>} : vector<8x8xf32>, vector<8x16xf32>, vector<8x16xf32> -> vector<8x16xf32>
    %c64 = arith.constant 64 : index
    %c0_31 = arith.constant 0 : index
    %58 = vector.load %arg2[%c64, %c0_31] : memref<352x192xf32, #tpu.memory_space<vmem>>, vector<16x64xf32>
    %cst_32 = arith.constant dense<0.000000e+00> : vector<8x64xf32>
    %59 = tpu.matmul %57, %58, %cst_32 {dimension_numbers = #tpu.dot_dimension_numbers<[1], [0], [0], [1], [0, 0, 1, 1], [], []>} : vector<8x16xf32>, vector<16x64xf32>, vector<8x64xf32> -> vector<8x64xf32>
    %60 = vector.extract_strided_slice %44 {offsets = [24, 0], sizes = [8, 8], strides = [1, 1]} : vector<32x8xf32> to vector<8x8xf32>
    %61 = vector.extract_strided_slice %19 {offsets = [0, 176], sizes = [8, 16], strides = [1, 1]} : vector<8x192xf32> to vector<8x16xf32>
    %cst_33 = arith.constant dense<0.000000e+00> : vector<8x16xf32>
    %62 = tpu.matmul %60, %61, %cst_33 {dimension_numbers = #tpu.dot_dimension_numbers<[1], [0], [0], [1], [0, 0, 1, 1], [], []>} : vector<8x8xf32>, vector<8x16xf32>, vector<8x16xf32> -> vector<8x16xf32>
    %c80 = arith.constant 80 : index
    %c0_34 = arith.constant 0 : index
    %63 = vector.load %arg2[%c80, %c0_34] : memref<352x192xf32, #tpu.memory_space<vmem>>, vector<16x64xf32>
    %cst_35 = arith.constant dense<0.000000e+00> : vector<8x64xf32>
    %64 = tpu.matmul %62, %63, %cst_35 {dimension_numbers = #tpu.dot_dimension_numbers<[1], [0], [0], [1], [0, 0, 1, 1], [], []>} : vector<8x16xf32>, vector<16x64xf32>, vector<8x64xf32> -> vector<8x64xf32>
    %65 = arith.addf %49, %54 : vector<8x64xf32>
    %66 = arith.addf %59, %64 : vector<8x64xf32>
    %67 = arith.addf %65, %66 : vector<8x64xf32>
    %68 = vector.broadcast %4 : vector<1x64xf32> to vector<8x64xf32>
    %69 = arith.addf %67, %68 : vector<8x64xf32>
    %70 = arith.addf %16, %69 : vector<8x64xf32>
    %cst_36 = arith.constant dense<0.000000e+00> : vector<8xf32>
    %71 = vector.multi_reduction <add>, %70, %cst_36 [1] : vector<8x64xf32> to vector<8xf32>
    %72 = vector.shape_cast %71 : vector<8xf32> to vector<8x1xf32>
    %cst_37 = arith.constant 6.400000e+01 : f32
    %73 = vector.broadcast %cst_37 : f32 to vector<8x1xf32>
    %74 = arith.divf %72, %73 : vector<8x1xf32>
    %75 = vector.broadcast %74 : vector<8x1xf32> to vector<8x64xf32>
    %76 = arith.subf %70, %75 : vector<8x64xf32>
    %77 = arith.mulf %76, %76 : vector<8x64xf32>
    %cst_38 = arith.constant dense<0.000000e+00> : vector<8xf32>
    %78 = vector.multi_reduction <add>, %77, %cst_38 [1] : vector<8x64xf32> to vector<8xf32>
    %79 = vector.shape_cast %78 : vector<8xf32> to vector<8x1xf32>
    %cst_39 = arith.constant 6.400000e+01 : f32
    %80 = vector.broadcast %cst_39 : f32 to vector<8x1xf32>
    %81 = arith.divf %79, %80 : vector<8x1xf32>
    %cst_40 = arith.constant 9.99999974E-6 : f32
    %82 = vector.broadcast %cst_40 : f32 to vector<8x1xf32>
    %83 = arith.addf %81, %82 : vector<8x1xf32>
    %84 = math.rsqrt %83 : vector<8x1xf32>
    %85 = vector.broadcast %84 : vector<8x1xf32> to vector<8x64xf32>
    %86 = arith.mulf %76, %85 : vector<8x64xf32>
    %87 = vector.broadcast %5 : vector<1x64xf32> to vector<8x64xf32>
    %88 = arith.mulf %86, %87 : vector<8x64xf32>
    %89 = vector.broadcast %6 : vector<1x64xf32> to vector<8x64xf32>
    %90 = arith.addf %88, %89 : vector<8x64xf32>
    %c96 = arith.constant 96 : index
    %c0_41 = arith.constant 0 : index
    %91 = vector.load %arg2[%c96, %c0_41] : memref<352x192xf32, #tpu.memory_space<vmem>>, vector<64x128xf32>
    %cst_42 = arith.constant dense<0.000000e+00> : vector<8x128xf32>
    %92 = tpu.matmul %90, %91, %cst_42 {dimension_numbers = #tpu.dot_dimension_numbers<[1], [0], [0], [1], [0, 0, 1, 1], [], []>} : vector<8x64xf32>, vector<64x128xf32>, vector<8x128xf32> -> vector<8x128xf32>
    %93 = vector.broadcast %7 : vector<1x128xf32> to vector<8x128xf32>
    %94 = arith.addf %92, %93 : vector<8x128xf32>
    %cst_43 = arith.constant 0.000000e+00 : f32
    %95 = vector.broadcast %cst_43 : f32 to vector<8x128xf32>
    %96 = arith.maximumf %94, %95 : vector<8x128xf32>
    %c160 = arith.constant 160 : index
    %c0_44 = arith.constant 0 : index
    %97 = vector.load %arg2[%c160, %c0_44] : memref<352x192xf32, #tpu.memory_space<vmem>>, vector<128x64xf32>
    %cst_45 = arith.constant dense<0.000000e+00> : vector<8x64xf32>
    %98 = tpu.matmul %96, %97, %cst_45 {dimension_numbers = #tpu.dot_dimension_numbers<[1], [0], [0], [1], [0, 0, 1, 1], [], []>} : vector<8x128xf32>, vector<128x64xf32>, vector<8x64xf32> -> vector<8x64xf32>
    %99 = vector.broadcast %8 : vector<1x64xf32> to vector<8x64xf32>
    %100 = arith.addf %98, %99 : vector<8x64xf32>
    %101 = arith.addf %90, %100 : vector<8x64xf32>
    %cst_46 = arith.constant dense<0.000000e+00> : vector<8xf32>
    %102 = vector.multi_reduction <add>, %101, %cst_46 [1] : vector<8x64xf32> to vector<8xf32>
    %103 = vector.shape_cast %102 : vector<8xf32> to vector<8x1xf32>
    %cst_47 = arith.constant 6.400000e+01 : f32
    %104 = vector.broadcast %cst_47 : f32 to vector<8x1xf32>
    %105 = arith.divf %103, %104 : vector<8x1xf32>
    %106 = vector.broadcast %105 : vector<8x1xf32> to vector<8x64xf32>
    %107 = arith.subf %101, %106 : vector<8x64xf32>
    %108 = arith.mulf %107, %107 : vector<8x64xf32>
    %cst_48 = arith.constant dense<0.000000e+00> : vector<8xf32>
    %109 = vector.multi_reduction <add>, %108, %cst_48 [1] : vector<8x64xf32> to vector<8xf32>
    %110 = vector.shape_cast %109 : vector<8xf32> to vector<8x1xf32>
    %cst_49 = arith.constant 6.400000e+01 : f32
    %111 = vector.broadcast %cst_49 : f32 to vector<8x1xf32>
    %112 = arith.divf %110, %111 : vector<8x1xf32>
    %cst_50 = arith.constant 9.99999974E-6 : f32
    %113 = vector.broadcast %cst_50 : f32 to vector<8x1xf32>
    %114 = arith.addf %112, %113 : vector<8x1xf32>
    %115 = math.rsqrt %114 : vector<8x1xf32>
    %116 = vector.broadcast %115 : vector<8x1xf32> to vector<8x64xf32>
    %117 = arith.mulf %107, %116 : vector<8x64xf32>
    %118 = vector.broadcast %9 : vector<1x64xf32> to vector<8x64xf32>
    %119 = arith.mulf %117, %118 : vector<8x64xf32>
    %120 = vector.broadcast %10 : vector<1x64xf32> to vector<8x64xf32>
    %121 = arith.addf %119, %120 : vector<8x64xf32>
    %c288 = arith.constant 288 : index
    %c0_51 = arith.constant 0 : index
    %122 = vector.load %arg2[%c288, %c0_51] : memref<352x192xf32, #tpu.memory_space<vmem>>, vector<64x128xf32>
    %cst_52 = arith.constant dense<0.000000e+00> : vector<8x128xf32>
    %123 = tpu.matmul %121, %122, %cst_52 {dimension_numbers = #tpu.dot_dimension_numbers<[1], [0], [0], [1], [0, 0, 1, 1], [], []>} : vector<8x64xf32>, vector<64x128xf32>, vector<8x128xf32> -> vector<8x128xf32>
    %124 = vector.broadcast %11 : vector<1x128xf32> to vector<8x128xf32>
    %125 = arith.addf %123, %124 : vector<8x128xf32>
    %c0_53 = arith.constant 0 : index
    %c0_54 = arith.constant 0 : index
    %c0_55 = arith.constant 0 : index
    %126 = vector.load %arg4[%c0_53, %c0_54, %c0_55] : memref<1x8x128xf32, #tpu.memory_space<vmem>>, vector<1x8x128xf32>
    %127 = vector.shape_cast %126 : vector<1x8x128xf32> to vector<8x128xf32>
    %128 = vector.shape_cast %125 : vector<8x128xf32> to vector<1x8x128xf32>
    tpu.vector_store %arg4[%c0_53, %c0_54, %c0_55], %128 {strides = array<i32>} : memref<1x8x128xf32, #tpu.memory_space<vmem>>, vector<1x8x128xf32>,
    return
  }
  func.func @transform_0(%arg0: i32) -> (i32, i32, i32) {
    %c0_i32 = arith.constant 0 : i32
    %c0_i32_0 = arith.constant 0 : i32
    %c0_i32_1 = arith.constant 0 : i32
    return %arg0, %c0_i32, %c0_i32_0 : i32, i32, i32
  }
  func.func @transform_1(%arg0: i32) -> (i32, i32) {
    %c0_i32 = arith.constant 0 : i32
    %c0_i32_0 = arith.constant 0 : i32
    %c0_i32_1 = arith.constant 0 : i32
    return %c0_i32, %c0_i32_0 : i32, i32
  }
  func.func @transform_2(%arg0: i32) -> (i32, i32) {
    %c0_i32 = arith.constant 0 : i32
    %c0_i32_0 = arith.constant 0 : i32
    %c0_i32_1 = arith.constant 0 : i32
    return %c0_i32, %c0_i32_0 : i32, i32
  }
  func.func @transform_3(%arg0: i32) -> (i32, i32, i32) {
    %c0_i32 = arith.constant 0 : i32
    %c0_i32_0 = arith.constant 0 : i32
    %c0_i32_1 = arith.constant 0 : i32
    return %arg0, %c0_i32, %c0_i32_0 : i32, i32, i32
  }
}

</mosaic_0001>

<llo_original>
// kernel: transformer_forward.1
$region0: #{transformer_forward.1}
  #allocation0 [shape = 'u32[]', space=smem, size = 0x4, offset = 0x4, fixed_abs, tag = 'smem constant byte address 0x4 - core index']
  #allocation1 [shape = 'u32[144,128]{1,0:T(1,128)}', space=vmem, size = 0x12000, scoped, tag = 'internal scratch']
  %s0 = inlined_call_operand.vmem [shape: f32[2,8,16], index: 0, kind: input, shape index: {}]
  %s1 = inlined_call_operand.vmem [shape: f32[352,192], index: 1, kind: input, shape index: {}]
  %s2 = inlined_call_operand.vmem [shape: f32[10,192], index: 2, kind: input, shape index: {}]
  %s3 = inlined_call_operand.vmem [shape: f32[2,8,128], index: 3, kind: output, shape index: {}]
  %s4 = sld [smem:[#allocation0]]
  $region45: #{transformer_forward.1} parent=0
    _
  %s6 = ssub.s32 1, %s4
  %s7 = scalar_select 0, %s6, %s4
  loop: start=0, step=1, limit=4
  $region2: #{transformer_forward.1} parent=0 // loop_pre_header
    _
  $region3: #{transformer_forward.1} parent=0 // loop_header
    %s9 = sphi 0, %s13
    %p10 = scmp.ge.s32.totalorder %s9, 4
    %s19 = sphi 0, %s21
    %s22 = sphi 0, %s19
    %s23 = sphi 0, %s22
    %s39 = sphi 0, %s23
    %s43 = sphi 0, %s43
    %s45 = sphi 0, %s43
    %s46 = sphi 0, %s45
    %s60 = sphi 0, %s46
    %s64 = sphi 0, %s64
    %s66 = sphi 0, %s64
    %s67 = sphi 0, %s66
    %s81 = sphi 0, %s67
    %s87 = sphi 0, %s89
    %s90 = sphi 0, %s87
    %s91 = sphi 0, %s90
    %s107 = sphi 0, %s91
  $region4: #{transformer_forward.1} parent=0 // loop_header_branch
    %12 = sbr.rel (%p10) target = $region8
  $region5: #{transformer_forward.1} parent=0 // loop_body
    %s14 = ssub.s32 %s9, 1
    %s15 = ssub.s32 %s9, 2
    %s16 = sadd.s32 %s9, 1
    %s17 = ssub.s32 %s9, %s16
    %p18 = scmp.eq.s32.totalorder %s17, 0
    %s20 = sadd.s32 %s19, 1
    %s21 = scalar_select %p18, %s19, %s20
    %p24 = pneg %p18
    %p25 = scmp.eq.s32.totalorder %s9, 1
    %p26 = por %p24, %p25
    %p27 = scmp.ne.s32.totalorder %s19, %s22
    %p28 = scmp.eq.s32.totalorder %s9, 0
    %p29 = por %p27, %p28
    %p30 = scmp.ne.s32.totalorder %s19, %s22
    %p31 = scmp.eq.s32.totalorder %s14, 1
    %p32 = por %p30, %p31
    %p33 = scmp.ne.s32.totalorder %s22, %s23
    %p34 = scmp.eq.s32.totalorder %s14, 0
    %p35 = por %p33, %p34
    %p36 = scmp.ne.s32.totalorder %s22, %s23
    %p37 = scmp.eq.s32.totalorder %s15, 1
    %p38 = por %p36, %p37
    %p40 = scmp.ne.s32.totalorder %s23, %s39
    %p41 = scmp.eq.s32.totalorder %s15, 0
    %p42 = por %p40, %p41
    %s44 = sadd.s32 %s43, 1
    %p47 = scmp.eq.s32.totalorder %s9, 1
    %p48 = scmp.ne.s32.totalorder %s43, %s45
    %p49 = scmp.eq.s32.totalorder %s9, 0
    %p50 = por %p48, %p49
    %p51 = scmp.ne.s32.totalorder %s43, %s45
    %p52 = scmp.eq.s32.totalorder %s14, 1
    %p53 = por %p51, %p52
    %p54 = scmp.ne.s32.totalorder %s45, %s46
    %p55 = scmp.eq.s32.totalorder %s14, 0
    %p56 = por %p54, %p55
    %p57 = scmp.ne.s32.totalorder %s45, %s46
    %p58 = scmp.eq.s32.totalorder %s15, 1
    %p59 = por %p57, %p58
    %p61 = scmp.ne.s32.totalorder %s46, %s60
    %p62 = scmp.eq.s32.totalorder %s15, 0
    %p63 = por %p61, %p62
    %s65 = sadd.s32 %s64, 1
    %p68 = scmp.eq.s32.totalorder %s9, 1
    %p69 = scmp.ne.s32.totalorder %s64, %s66
    %p70 = scmp.eq.s32.totalorder %s9, 0
    %p71 = por %p69, %p70
    %p72 = scmp.ne.s32.totalorder %s64, %s66
    %p73 = scmp.eq.s32.totalorder %s14, 1
    %p74 = por %p72, %p73
    %p75 = scmp.ne.s32.totalorder %s66, %s67
    %p76 = scmp.eq.s32.totalorder %s14, 0
    %p77 = por %p75, %p76
    %p78 = scmp.ne.s32.totalorder %s66, %s67
    %p79 = scmp.eq.s32.totalorder %s15, 1
    %p80 = por %p78, %p79
    %p82 = scmp.ne.s32.totalorder %s67, %s81
    %p83 = scmp.eq.s32.totalorder %s15, 0
    %p84 = por %p82, %p83
    %s85 = ssub.s32 %s9, %s16
    %p86 = scmp.eq.s32.totalorder %s85, 0
    %s88 = sadd.s32 %s87, 1
    %s89 = scalar_select %p86, %s87, %s88
    %p92 = pneg %p86
    %p93 = scmp.eq.s32.totalorder %s9, 1
    %p94 = por %p92, %p93
    %p95 = scmp.ne.s32.totalorder %s87, %s90
    %p96 = scmp.eq.s32.totalorder %s9, 0
    %p97 = por %p95, %p96
    %p98 = scmp.ne.s32.totalorder %s87, %s90
    %p99 = scmp.eq.s32.totalorder %s14, 1
    %p100 = por %p98, %p99
    %p101 = scmp.ne.s32.totalorder %s90, %s91
    %p102 = scmp.eq.s32.totalorder %s14, 0
    %p103 = por %p101, %p102
    %p104 = scmp.ne.s32.totalorder %s90, %s91
    %p105 = scmp.eq.s32.totalorder %s15, 1
    %p106 = por %p104, %p105
    %p108 = scmp.ne.s32.totalorder %s91, %s107
    %p109 = scmp.eq.s32.totalorder %s15, 0
    %p110 = por %p108, %p109
    %p111 = scmp.le.s32.totalorder 1, %s9
    %p112 = scmp.lt.s32.totalorder %s9, 3
    %p113 = pnand %p111, %p112
    %p114 = pneg %p113
    // Predicated region
    $region9: #{transformer_forward.1} parent=5 // pred_check
      _
    $region10: #{transformer_forward.1} parent=5 // pred_check_branch
      %116 = sbr.rel (%p113) target = $region12
    $region11: #{transformer_forward.1} parent=5 // pred_region
      %s117 = ssub.s32 %s9, 1
      // Predicated region
      $region13: #{transformer_forward.1} parent=11 // pred_check
        %p118 = pneg %p56
      $region14: #{transformer_forward.1} parent=11 // pred_check_branch
        %120 = sbr.rel (%p118) target = $region16
      $region15: #{transformer_forward.1} parent=11 // pred_region
        _
      $region16: #{transformer_forward.1} parent=11 // pred_fallthru
        _
      // Predicated region
      $region17: #{transformer_forward.1} parent=11 // pred_check
        %p121 = pneg %p77
      $region18: #{transformer_forward.1} parent=11 // pred_check_branch
        %123 = sbr.rel (%p121) target = $region20
      $region19: #{transformer_forward.1} parent=11 // pred_region
        _
      $region20: #{transformer_forward.1} parent=11 // pred_fallthru
        _
    $region12: #{transformer_forward.1} parent=5 // pred_fallthru
      _
    %p124 = scmp.lt.s32.totalorder %s9, 2
    // Predicated region
    $region21: #{transformer_forward.1} parent=5 // pred_check
      %p125 = pneg %p124
    $region22: #{transformer_forward.1} parent=5 // pred_check_branch
      %127 = sbr.rel (%p125) target = $region24
    $region23: #{transformer_forward.1} parent=5 // pred_region
      // Predicated region
      $region25: #{transformer_forward.1} parent=23 // pred_check
        %p128 = pneg %p29
      $region26: #{transformer_forward.1} parent=23 // pred_check_branch
        %130 = sbr.rel (%p128) target = $region28
      $region27: #{transformer_forward.1} parent=23 // pred_region
        %p131 = scmp.lt.s32.totalorder %s9, 1
        %s132 = scalar_select %p131, %s9, 1
        %s133 = smul.addr %s132, 8
        %s134 = scalar_lea.vmem %s0, %s133
      $region28: #{transformer_forward.1} parent=23 // pred_fallthru
        _
    $region24: #{transformer_forward.1} parent=5 // pred_fallthru
      _
    %p135 = scmp.le.s32.totalorder 1, %s9
    %p136 = scmp.lt.s32.totalorder %s9, 3
    %p137 = pnand %p135, %p136
    %p138 = pneg %p137
    // Predicated region
    $region29: #{transformer_forward.1} parent=5 // pred_check
      _
    $region30: #{transformer_forward.1} parent=5 // pred_check_branch
      %140 = sbr.rel (%p137) target = $region32
    $region31: #{transformer_forward.1} parent=5 // pred_region
      %s141 = ssub.s32 %s9, 1
      %p142 = scmp.lt.s32.totalorder %s14, 1
      %s143 = scalar_select %p142, %s14, 1
      %s144 = smul.addr %s143, 8
      %s145 = scalar_lea.vmem %s0, %s144
      %p146 = pneg %p35
      %p147 = pneg %p32
      %p148 = pneg %p56
      %p149 = pneg %p53
      %p150 = pneg %p77
      %p151 = pneg %p74
      %p152 = pneg %p103
      %p153 = pneg %p100
      %p154 = scmp.lt.s32.totalorder %s14, 1
      %s155 = scalar_select %p154, %s14, 1
      %s156 = smul.addr %s155, 8
      %s157 = scalar_lea.vmem %s3, %s156
      %p158 = scmp.lt.s32.totalorder %s14, 1
      %s159 = scalar_select %p158, %s14, 1
      %s160 = smul.addr %s159, 8
      %s161 = scalar_lea.vmem %s0, %s160
      %p162 = scmp.lt.s32.totalorder %s14, 1
      %s163 = scalar_select %p162, %s14, 1
      %s164 = smul.addr %s163, 8
      %s165 = scalar_lea.vmem %s3, %s164
      %v166 = vld [vmem:[%s161] sm:$0xff]
      %v167 = vld [vmem:[%s2] ss:$8 sm:$0x3]
      %v168 = vld [vmem:[%s2 + $0x1] ss:$0 sm:$0xff]
      %v169 = vld [vmem:[%s2 + $0x2] ss:$0 sm:$0xff]
      %v170 = vld [vmem:[%s2 + $0x3] ss:$0 sm:$0xff]
      %v171 = vld [vmem:[%s2 + $0x4] ss:$0 sm:$0xff]
      %v172 = vld [vmem:[%s2 + $0x5] ss:$0 sm:$0xff]
      %v173 = vld [vmem:[%s2 + $0x6] ss:$0 sm:$0xff]
      %v174 = vld [vmem:[%s2 + $0x7] ss:$0 sm:$0xff]
      %v175 = vld [vmem:[%s2 + $0x10] ss:$0 sm:$0xff]
      %v176 = vld [vmem:[%s2 + $0x11] ss:$0 sm:$0xff]
      %v177 = vld [vmem:[%s1] sm:$0xff]
      %v178 = vld [vmem:[%s1 + $0x8] sm:$0xff]
      %v179 = vld [vmem:[%s1 + $0x10] sm:$0xff]
      %v180 = vld [vmem:[%s1 + $0x18] sm:$0xff]
      %v181 = vld [vmem:[%s1 + $0x20] sm:$0xff]
      %v182 = vld [vmem:[%s1 + $0x30] sm:$0xff]
      %vm183 = vcmask 130048
      %v185 = vsel %vm183, %v166, 0
      %187 = vmatprep.subr.mxu0 0.0
      %188 = vmatpush1.msra.mxu0 0.0
      %189 = vmatprep.subr.mxu0 0.0
      %190 = vmatpush1.msra.mxu0 0.0
      %191 = vmatprep.subr.mxu0 0.0
      %192 = vmatpush1.msra.mxu0 0.0
      %193 = vmatprep.subr.mxu0 0.0
      %194 = vmatpush1.msra.mxu0 0.0
      %195 = vmatprep.subr.mxu0 0.0
      %196 = vmatpush1.msra.mxu0 0.0
      %197 = vmatprep.subr.mxu0 0.0
      %198 = vmatpush1.msra.mxu0 0.0
      %199 = vmatprep.subr.mxu0 0.0
      %200 = vmatpush1.msra.mxu0 0.0
      %201 = vmatprep.subr.mxu0 0.0
      %202 = vmatpush1.msra.mxu0 0.0
      %203 = vmatprep.subr.mxu0 0.0
      %204 = vmatpush1.msra.mxu0 0.0
      %205 = vmatprep.subr.mxu0 0.0
      %206 = vmatpush1.msra.mxu0 0.0
      %207 = vmatprep.subr.mxu0 0.0
      %208 = vmatpush1.msra.mxu0 0.0
      %209 = vmatprep.subr.mxu0 0.0
      %210 = vmatpush1.msra.mxu0 0.0
      %211 = vmatprep.subr.mxu0 0.0
      %212 = vmatpush1.msra.mxu0 0.0
      %213 = vmatprep.subr.mxu0 0.0
      %214 = vmatpush1.msra.mxu0 0.0
      %215 = vmatprep.subr.mxu0 0.0
      %216 = vmatpush1.msra.mxu0 %v182
      %217 = vmatprep.subr.mxu0 0.0
      %218 = vmatpush1.msra.mxu0 %v181
      %219 = vmatprep.subr.mxu0 0.0
      %220 = vmatpush2.msra.mxu0 0.0
      %221 = vmatprep.subr.mxu0 0.0
      %222 = vmatpush2.msra.mxu0 0.0
      %223 = vmatprep.subr.mxu0 0.0
      %224 = vmatpush2.msra.mxu0 0.0
      %225 = vmatprep.subr.mxu0 0.0
      %226 = vmatpush2.msra.mxu0 0.0
      %227 = vmatprep.subr.mxu0 0.0
      %228 = vmatpush2.msra.mxu0 0.0
      %229 = vmatprep.subr.mxu0 0.0
      %230 = vmatpush2.msra.mxu0 0.0
      %231 = vmatprep.subr.mxu0 0.0
      %232 = vmatpush2.msra.mxu0 0.0
      %233 = vmatprep.subr.mxu0 0.0
      %234 = vmatpush2.msra.mxu0 0.0
      %235 = vmatprep.subr.mxu0 0.0
      %236 = vmatpush2.msra.mxu0 0.0
      %237 = vmatprep.subr.mxu0 0.0
      %238 = vmatpush2.msra.mxu0 0.0
      %239 = vmatprep.subr.mxu0 0.0
      %240 = vmatpush2.msra.mxu0 0.0
      %241 = vmatprep.subr.mxu0 0.0
      %242 = vmatpush2.msra.mxu0 0.0
      %243 = vmatprep.subr.mxu0 0.0
      %244 = vmatpush2.msra.mxu0 0.0
      %245 = vmatprep.subr.mxu0 0.0
      %246 = vmatpush2.msra.mxu0 0.0
      %247 = vmatprep.subr.mxu0 0.0
      %248 = vmatpush2.msra.mxu0 0.0
      %249 = vmatprep.subr.mxu0 0.0
      %250 = vmatpush2.msra.mxu0 0.0
      %251 = vmatprep.mubr.f32.mxu0 0.0
      %252 = vmatmul.mubr.f32.gmra.mxu0 %v185
      %v253 = vpop.f32.mrf.mxu0
      %v254 = vadd.f32 %v168, %v253
      %v255 = vpop.f32.mrf.mxu0
      %256 = vdwg.mxu0
      %v258 = vlaneseq
      %v259 = vshrl.u32 %v258, 7
      %v260 = vsub.s32 0, %v259
      %v261 = vrot.slane %v167, %v260
      %v262 = vlaneseq
      %v263 = vshrl.u32 %v262, 7
      %v264 = vsub.s32 1, %v263
      %v265 = vrot.slane %v167, %v264
      %268 = vmatprep.subr.mxu0 0.0
      %269 = vmatpush1.msra.mxu0 0.0
      %270 = vmatprep.subr.mxu0 0.0
      %271 = vmatpush1.msra.mxu0 0.0
      %272 = vmatprep.subr.mxu0 0.0
      %273 = vmatpush1.msra.mxu0 0.0
      %274 = vmatprep.subr.mxu0 0.0
      %275 = vmatpush1.msra.mxu0 0.0
      %276 = vmatprep.subr.mxu0 0.0
      %277 = vmatpush1.msra.mxu0 0.0
      %278 = vmatprep.subr.mxu0 0.0
      %279 = vmatpush1.msra.mxu0 0.0
      %280 = vmatprep.subr.mxu0 0.0
      %281 = vmatpush1.msra.mxu0 0.0
      %282 = vmatprep.subr.mxu0 0.0
      %283 = vmatpush1.msra.mxu0 0.0
      %284 = vmatprep.subr.mxu0 0.0
      %285 = vmatpush1.msra.mxu0 0.0
      %286 = vmatprep.subr.mxu0 0.0
      %287 = vmatpush1.msra.mxu0 0.0
      %288 = vmatprep.subr.mxu0 0.0
      %289 = vmatpush1.msra.mxu0 0.0
      %290 = vmatprep.subr.mxu0 0.0
      %291 = vmatpush1.msra.mxu0 0.0
      %292 = vmatprep.subr.mxu0 0.0
      %293 = vmatpush1.msra.mxu0 0.0
      %294 = vmatprep.subr.mxu0 0.0
      %295 = vmatpush1.msra.mxu0 0.0
      %296 = vmatprep.subr.mxu0 %v180
      %297 = vmatpush1.msra.mxu0 %v179
      %298 = vmatprep.subr.mxu0 %v178
      %299 = vmatpush1.msra.mxu0 %v177
      %300 = vmatprep.subr.mxu0 0.0
      %301 = vmatpush2.msra.mxu0 0.0
      %302 = vmatprep.subr.mxu0 0.0
      %303 = vmatpush2.msra.mxu0 0.0
      %304 = vmatprep.subr.mxu0 0.0
      %305 = vmatpush2.msra.mxu0 0.0
      %306 = vmatprep.subr.mxu0 0.0
      %307 = vmatpush2.msra.mxu0 0.0
      %308 = vmatprep.subr.mxu0 0.0
      %309 = vmatpush2.msra.mxu0 0.0
      %310 = vmatprep.subr.mxu0 0.0
      %311 = vmatpush2.msra.mxu0 0.0
      %312 = vmatprep.subr.mxu0 0.0
      %313 = vmatpush2.msra.mxu0 0.0
      %314 = vmatprep.subr.mxu0 0.0
      %315 = vmatpush2.msra.mxu0 0.0
      %316 = vmatprep.subr.mxu0 0.0
      %317 = vmatpush2.msra.mxu0 0.0
      %318 = vmatprep.subr.mxu0 0.0
      %319 = vmatpush2.msra.mxu0 0.0
      %320 = vmatprep.subr.mxu0 0.0
      %321 = vmatpush2.msra.mxu0 0.0
      %322 = vmatprep.subr.mxu0 0.0
      %323 = vmatpush2.msra.mxu0 0.0
      %324 = vmatprep.subr.mxu0 0.0
      %325 = vmatpush2.msra.mxu0 0.0
      %326 = vmatprep.subr.mxu0 0.0
      %327 = vmatpush2.msra.mxu0 0.0
      %328 = vmatprep.subr.mxu0 0.0
      %329 = vmatpush2.msra.mxu0 0.0
      %330 = vmatprep.subr.mxu0 0.0
      %331 = vmatpush2.msra.mxu0 0.0
      %332 = vmatprep.mubr.f32.mxu0 0.0
      %333 = vmatmul.mubr.f32.gmra.mxu0 %v185
      %v334 = vpop.f32.mrf.mxu0
      %v335 = vadd.f32 %v261, %v334
      %v336 = vpop.f32.mrf.mxu0
      %v337 = vadd.f32 %v265, %v336
      %338 = vdwg.mxu0
      %340 = vrot.lane.b32.xlu0 %v335, 64
      %v341 = vpop.permute.xlu0 %340
      %v342 = vsel %vm183, %v335, 0
      %v344 = vsel %vm183, %v341, 0
      %346 = vmatprep.subr.mxu0 0.0
      %347 = vmatpush1.xpose.msra.mxu0 0.0
      %348 = vmatprep.subr.mxu0 0.0
      %349 = vmatpush1.xpose.msra.mxu0 0.0
      %350 = vmatprep.subr.mxu0 0.0
      %351 = vmatpush1.xpose.msra.mxu0 0.0
      %352 = vmatprep.subr.mxu0 0.0
      %353 = vmatpush1.xpose.msra.mxu0 0.0
      %354 = vmatprep.subr.mxu0 0.0
      %355 = vmatpush1.xpose.msra.mxu0 0.0
      %356 = vmatprep.subr.mxu0 0.0
      %357 = vmatpush1.xpose.msra.mxu0 0.0
      %358 = vmatprep.subr.mxu0 0.0
      %359 = vmatpush1.xpose.msra.mxu0 0.0
      %360 = vmatprep.subr.mxu0 0.0
      %361 = vmatpush1.xpose.msra.mxu0 0.0
      %362 = vmatprep.subr.mxu0 0.0
      %363 = vmatpush1.xpose.msra.mxu0 0.0
      %364 = vmatprep.subr.mxu0 0.0
      %365 = vmatpush1.xpose.msra.mxu0 0.0
      %366 = vmatprep.subr.mxu0 0.0
      %367 = vmatpush1.xpose.msra.mxu0 0.0
      %368 = vmatprep.subr.mxu0 0.0
      %369 = vmatpush1.xpose.msra.mxu0 0.0
      %370 = vmatprep.subr.mxu0 0.0
      %371 = vmatpush1.xpose.msra.mxu0 0.0
      %372 = vmatprep.subr.mxu0 0.0
      %373 = vmatpush1.xpose.msra.mxu0 0.0
      %374 = vmatprep.subr.mxu0 0.0
      %375 = vmatpush1.xpose.msra.mxu0 0.0
      %376 = vmatprep.subr.mxu0 0.0
      %377 = vmatpush1.xpose.msra.mxu0 %v344
      %378 = vmatprep.subr.mxu0 0.0
      %379 = vmatpush2.xpose.msra.mxu0 0.0
      %380 = vmatprep.subr.mxu0 0.0
      %381 = vmatpush2.xpose.msra.mxu0 0.0
      %382 = vmatprep.subr.mxu0 0.0
      %383 = vmatpush2.xpose.msra.mxu0 0.0
      %384 = vmatprep.subr.mxu0 0.0
      %385 = vmatpush2.xpose.msra.mxu0 0.0
      %386 = vmatprep.subr.mxu0 0.0
      %387 = vmatpush2.xpose.msra.mxu0 0.0
      %388 = vmatprep.subr.mxu0 0.0
      %389 = vmatpush2.xpose.msra.mxu0 0.0
      %390 = vmatprep.subr.mxu0 0.0
      %391 = vmatpush2.xpose.msra.mxu0 0.0
      %392 = vmatprep.subr.mxu0 0.0
      %393 = vmatpush2.xpose.msra.mxu0 0.0
      %394 = vmatprep.subr.mxu0 0.0
      %395 = vmatpush2.xpose.msra.mxu0 0.0
      %396 = vmatprep.subr.mxu0 0.0
      %397 = vmatpush2.xpose.msra.mxu0 0.0
      %398 = vmatprep.subr.mxu0 0.0
      %399 = vmatpush2.xpose.msra.mxu0 0.0
      %400 = vmatprep.subr.mxu0 0.0
      %401 = vmatpush2.xpose.msra.mxu0 0.0
      %402 = vmatprep.subr.mxu0 0.0
      %403 = vmatpush2.xpose.msra.mxu0 0.0
      %404 = vmatprep.subr.mxu0 0.0
      %405 = vmatpush2.xpose.msra.mxu0 0.0
      %406 = vmatprep.subr.mxu0 0.0
      %407 = vmatpush2.xpose.msra.mxu0 0.0
      %408 = vmatprep.subr.mxu0 0.0
      %409 = vmatpush2.xpose.msra.mxu0 0.0
      %410 = vmatprep.mubr.f32.mxu0 0.0
      %411 = vmatmul.mubr.f32.gmra.mxu0 %v342
      %v412 = vpop.f32.mrf.mxu0
      %v413 = vadd.f32 0.0, %v412
      %v414 = vpop.f32.mrf.mxu0
      %415 = vdwg.mxu0
      %416 = vrot.lane.b32.xlu0 %v335, 112
      %v417 = vpop.permute.xlu0 %416
      %418 = vrot.lane.b32.xlu0 %v335, 48
      %v419 = vpop.permute.xlu0 %418
      %v420 = vsel %vm183, %v417, 0
      %v422 = vsel %vm183, %v419, 0
      %424 = vmatprep.subr.mxu0 0.0
      %425 = vmatpush1.xpose.msra.mxu0 0.0
      %426 = vmatprep.subr.mxu0 0.0
      %427 = vmatpush1.xpose.msra.mxu0 0.0
      %428 = vmatprep.subr.mxu0 0.0
      %429 = vmatpush1.xpose.msra.mxu0 0.0
      %430 = vmatprep.subr.mxu0 0.0
      %431 = vmatpush1.xpose.msra.mxu0 0.0
      %432 = vmatprep.subr.mxu0 0.0
      %433 = vmatpush1.xpose.msra.mxu0 0.0
      %434 = vmatprep.subr.mxu0 0.0
      %435 = vmatpush1.xpose.msra.mxu0 0.0
      %436 = vmatprep.subr.mxu0 0.0
      %437 = vmatpush1.xpose.msra.mxu0 0.0
      %438 = vmatprep.subr.mxu0 0.0
      %439 = vmatpush1.xpose.msra.mxu0 0.0
      %440 = vmatprep.subr.mxu0 0.0
      %441 = vmatpush1.xpose.msra.mxu0 0.0
      %442 = vmatprep.subr.mxu0 0.0
      %443 = vmatpush1.xpose.msra.mxu0 0.0
      %444 = vmatprep.subr.mxu0 0.0
      %445 = vmatpush1.xpose.msra.mxu0 0.0
      %446 = vmatprep.subr.mxu0 0.0
      %447 = vmatpush1.xpose.msra.mxu0 0.0
      %448 = vmatprep.subr.mxu0 0.0
      %449 = vmatpush1.xpose.msra.mxu0 0.0
      %450 = vmatprep.subr.mxu0 0.0
      %451 = vmatpush1.xpose.msra.mxu0 0.0
      %452 = vmatprep.subr.mxu0 0.0
      %453 = vmatpush1.xpose.msra.mxu0 0.0
      %454 = vmatprep.subr.mxu0 0.0
      %455 = vmatpush1.xpose.msra.mxu0 %v422
      %456 = vmatprep.subr.mxu0 0.0
      %457 = vmatpush2.xpose.msra.mxu0 0.0
      %458 = vmatprep.subr.mxu0 0.0
      %459 = vmatpush2.xpose.msra.mxu0 0.0
      %460 = vmatprep.subr.mxu0 0.0
      %461 = vmatpush2.xpose.msra.mxu0 0.0
      %462 = vmatprep.subr.mxu0 0.0
      %463 = vmatpush2.xpose.msra.mxu0 0.0
      %464 = vmatprep.subr.mxu0 0.0
      %465 = vmatpush2.xpose.msra.mxu0 0.0
      %466 = vmatprep.subr.mxu0 0.0
      %467 = vmatpush2.xpose.msra.mxu0 0.0
      %468 = vmatprep.subr.mxu0 0.0
      %469 = vmatpush2.xpose.msra.mxu0 0.0
      %470 = vmatprep.subr.mxu0 0.0
      %471 = vmatpush2.xpose.msra.mxu0 0.0
      %472 = vmatprep.subr.mxu0 0.0
      %473 = vmatpush2.xpose.msra.mxu0 0.0
      %474 = vmatprep.subr.mxu0 0.0
      %475 = vmatpush2.xpose.msra.mxu0 0.0
      %476 = vmatprep.subr.mxu0 0.0
      %477 = vmatpush2.xpose.msra.mxu0 0.0
      %478 = vmatprep.subr.mxu0 0.0
      %479 = vmatpush2.xpose.msra.mxu0 0.0
      %480 = vmatprep.subr.mxu0 0.0
      %481 = vmatpush2.xpose.msra.mxu0 0.0
      %482 = vmatprep.subr.mxu0 0.0
      %483 = vmatpush2.xpose.msra.mxu0 0.0
      %484 = vmatprep.subr.mxu0 0.0
      %485 = vmatpush2.xpose.msra.mxu0 0.0
      %486 = vmatprep.subr.mxu0 0.0
      %487 = vmatpush2.xpose.msra.mxu0 0.0
      %488 = vmatprep.mubr.f32.mxu0 0.0
      %489 = vmatmul.mubr.f32.gmra.mxu0 %v420
      %v490 = vpop.f32.mrf.mxu0
      %v491 = vadd.f32 0.0, %v490
      %v492 = vpop.f32.mrf.mxu0
      %493 = vdwg.mxu0
      %494 = vrot.lane.b32.xlu0 %v335, 96
      %v495 = vpop.permute.xlu0 %494
      %496 = vrot.lane.b32.xlu0 %v335, 32
      %v497 = vpop.permute.xlu0 %496
      %v498 = vsel %vm183, %v495, 0
      %v500 = vsel %vm183, %v497, 0
      %502 = vmatprep.subr.mxu0 0.0
      %503 = vmatpush1.xpose.msra.mxu0 0.0
      %504 = vmatprep.subr.mxu0 0.0
      %505 = vmatpush1.xpose.msra.mxu0 0.0
      %506 = vmatprep.subr.mxu0 0.0
      %507 = vmatpush1.xpose.msra.mxu0 0.0
      %508 = vmatprep.subr.mxu0 0.0
      %509 = vmatpush1.xpose.msra.mxu0 0.0
      %510 = vmatprep.subr.mxu0 0.0
      %511 = vmatpush1.xpose.msra.mxu0 0.0
      %512 = vmatprep.subr.mxu0 0.0
      %513 = vmatpush1.xpose.msra.mxu0 0.0
      %514 = vmatprep.subr.mxu0 0.0
      %515 = vmatpush1.xpose.msra.mxu0 0.0
      %516 = vmatprep.subr.mxu0 0.0
      %517 = vmatpush1.xpose.msra.mxu0 0.0
      %518 = vmatprep.subr.mxu0 0.0
      %519 = vmatpush1.xpose.msra.mxu0 0.0
      %520 = vmatprep.subr.mxu0 0.0
      %521 = vmatpush1.xpose.msra.mxu0 0.0
      %522 = vmatprep.subr.mxu0 0.0
      %523 = vmatpush1.xpose.msra.mxu0 0.0
      %524 = vmatprep.subr.mxu0 0.0
      %525 = vmatpush1.xpose.msra.mxu0 0.0
      %526 = vmatprep.subr.mxu0 0.0
      %527 = vmatpush1.xpose.msra.mxu0 0.0
      %528 = vmatprep.subr.mxu0 0.0
      %529 = vmatpush1.xpose.msra.mxu0 0.0
      %530 = vmatprep.subr.mxu0 0.0
      %531 = vmatpush1.xpose.msra.mxu0 0.0
      %532 = vmatprep.subr.mxu0 0.0
      %533 = vmatpush1.xpose.msra.mxu0 %v500
      %534 = vmatprep.subr.mxu0 0.0
      %535 = vmatpush2.xpose.msra.mxu0 0.0
      %536 = vmatprep.subr.mxu0 0.0
      %537 = vmatpush2.xpose.msra.mxu0 0.0
      %538 = vmatprep.subr.mxu0 0.0
      %539 = vmatpush2.xpose.msra.mxu0 0.0
      %540 = vmatprep.subr.mxu0 0.0
      %541 = vmatpush2.xpose.msra.mxu0 0.0
      %542 = vmatprep.subr.mxu0 0.0
      %543 = vmatpush2.xpose.msra.mxu0 0.0
      %544 = vmatprep.subr.mxu0 0.0
      %545 = vmatpush2.xpose.msra.mxu0 0.0
      %546 = vmatprep.subr.mxu0 0.0
      %547 = vmatpush2.xpose.msra.mxu0 0.0
      %548 = vmatprep.subr.mxu0 0.0
      %549 = vmatpush2.xpose.msra.mxu0 0.0
      %550 = vmatprep.subr.mxu0 0.0
      %551 = vmatpush2.xpose.msra.mxu0 0.0
      %552 = vmatprep.subr.mxu0 0.0
      %553 = vmatpush2.xpose.msra.mxu0 0.0
      %554 = vmatprep.subr.mxu0 0.0
      %555 = vmatpush2.xpose.msra.mxu0 0.0
      %556 = vmatprep.subr.mxu0 0.0
      %557 = vmatpush2.xpose.msra.mxu0 0.0
      %558 = vmatprep.subr.mxu0 0.0
      %559 = vmatpush2.xpose.msra.mxu0 0.0
      %560 = vmatprep.subr.mxu0 0.0
      %561 = vmatpush2.xpose.msra.mxu0 0.0
      %562 = vmatprep.subr.mxu0 0.0
      %563 = vmatpush2.xpose.msra.mxu0 0.0
      %564 = vmatprep.subr.mxu0 0.0
      %565 = vmatpush2.xpose.msra.mxu0 0.0
      %566 = vmatprep.mubr.f32.mxu0 0.0
      %567 = vmatmul.mubr.f32.gmra.mxu0 %v498
      %v568 = vpop.f32.mrf.mxu0
      %v569 = vadd.f32 0.0, %v568
      %v570 = vpop.f32.mrf.mxu0
      %571 = vdwg.mxu0
      %572 = vrot.lane.b32.xlu0 %v335, 80
      %v573 = vpop.permute.xlu0 %572
      %574 = vrot.lane.b32.xlu0 %v335, 16
      %v575 = vpop.permute.xlu0 %574
      %v576 = vsel %vm183, %v573, 0
      %v578 = vsel %vm183, %v575, 0
      %580 = vmatprep.subr.mxu0 0.0
      %581 = vmatpush1.xpose.msra.mxu0 0.0
      %582 = vmatprep.subr.mxu0 0.0
      %583 = vmatpush1.xpose.msra.mxu0 0.0
      %584 = vmatprep.subr.mxu0 0.0
      %585 = vmatpush1.xpose.msra.mxu0 0.0
      %586 = vmatprep.subr.mxu0 0.0
      %587 = vmatpush1.xpose.msra.mxu0 0.0
      %588 = vmatprep.subr.mxu0 0.0
      %589 = vmatpush1.xpose.msra.mxu0 0.0
      %590 = vmatprep.subr.mxu0 0.0
      %591 = vmatpush1.xpose.msra.mxu0 0.0
      %592 = vmatprep.subr.mxu0 0.0
      %593 = vmatpush1.xpose.msra.mxu0 0.0
      %594 = vmatprep.subr.mxu0 0.0
      %595 = vmatpush1.xpose.msra.mxu0 0.0
      %596 = vmatprep.subr.mxu0 0.0
      %597 = vmatpush1.xpose.msra.mxu0 0.0
      %598 = vmatprep.subr.mxu0 0.0
      %599 = vmatpush1.xpose.msra.mxu0 0.0
      %600 = vmatprep.subr.mxu0 0.0
      %601 = vmatpush1.xpose.msra.mxu0 0.0
      %602 = vmatprep.subr.mxu0 0.0
      %603 = vmatpush1.xpose.msra.mxu0 0.0
      %604 = vmatprep.subr.mxu0 0.0
      %605 = vmatpush1.xpose.msra.mxu0 0.0
      %606 = vmatprep.subr.mxu0 0.0
      %607 = vmatpush1.xpose.msra.mxu0 0.0
      %608 = vmatprep.subr.mxu0 0.0
      %609 = vmatpush1.xpose.msra.mxu0 0.0
      %610 = vmatprep.subr.mxu0 0.0
      %611 = vmatpush1.xpose.msra.mxu0 %v578
      %612 = vmatprep.subr.mxu0 0.0
      %613 = vmatpush2.xpose.msra.mxu0 0.0
      %614 = vmatprep.subr.mxu0 0.0
      %615 = vmatpush2.xpose.msra.mxu0 0.0
      %616 = vmatprep.subr.mxu0 0.0
      %617 = vmatpush2.xpose.msra.mxu0 0.0
      %618 = vmatprep.subr.mxu0 0.0
      %619 = vmatpush2.xpose.msra.mxu0 0.0
      %620 = vmatprep.subr.mxu0 0.0
      %621 = vmatpush2.xpose.msra.mxu0 0.0
      %622 = vmatprep.subr.mxu0 0.0
      %623 = vmatpush2.xpose.msra.mxu0 0.0
      %624 = vmatprep.subr.mxu0 0.0
      %625 = vmatpush2.xpose.msra.mxu0 0.0
      %626 = vmatprep.subr.mxu0 0.0
      %627 = vmatpush2.xpose.msra.mxu0 0.0
      %628 = vmatprep.subr.mxu0 0.0
      %629 = vmatpush2.xpose.msra.mxu0 0.0
      %630 = vmatprep.subr.mxu0 0.0
      %631 = vmatpush2.xpose.msra.mxu0 0.0
      %632 = vmatprep.subr.mxu0 0.0
      %633 = vmatpush2.xpose.msra.mxu0 0.0
      %634 = vmatprep.subr.mxu0 0.0
      %635 = vmatpush2.xpose.msra.mxu0 0.0
      %636 = vmatprep.subr.mxu0 0.0
      %637 = vmatpush2.xpose.msra.mxu0 0.0
      %638 = vmatprep.subr.mxu0 0.0
      %639 = vmatpush2.xpose.msra.mxu0 0.0
      %640 = vmatprep.subr.mxu0 0.0
      %641 = vmatpush2.xpose.msra.mxu0 0.0
      %642 = vmatprep.subr.mxu0 0.0
      %643 = vmatpush2.xpose.msra.mxu0 0.0
      %644 = vmatprep.mubr.f32.mxu0 0.0
      %645 = vmatmul.mubr.f32.gmra.mxu0 %v576
      %v646 = vpop.f32.mrf.mxu0
      %v647 = vadd.f32 0.0, %v646
      %v648 = vpop.f32.mrf.mxu0
      %649 = vdwg.mxu0
      %v650 = vmul.f32 %v413, 0.25
      %v651 = vmul.f32 %v491, 0.25
      %v652 = vmul.f32 %v569, 0.25
      %v653 = vmul.f32 %v647, 0.25
      %vm654 = vcmask 64512
      %v655 = vsel %vm654, %v650, -inf
      %656 = vmax.xlane.f32.xlu0 %v655
      %v657 = vpop.xlane.xlu0 %656
      %v658 = vsel %vm654, %v651, -inf
      %659 = vmax.xlane.f32.xlu0 %v658
      %v660 = vpop.xlane.xlu0 %659
      %v661 = vsel %vm654, %v652, -inf
      %662 = vmax.xlane.f32.xlu0 %v661
      %v663 = vpop.xlane.xlu0 %662
      %v664 = vsel %vm654, %v653, -inf
      %665 = vmax.xlane.f32.xlu0 %v664
      %v666 = vpop.xlane.xlu0 %665
      %v667 = vsub.f32 %v650, %v657
      %v668 = vsub.f32 %v651, %v660
      %v669 = vsub.f32 %v652, %v663
      %v670 = vsub.f32 %v653, %v666
      %v671 = vmul.f32 %v667, 1.442695
      %v672 = vpow.pop %v671
      %v673 = vmul.f32 %v668, 1.442695
      %v674 = vpow.pop %v673
      %v675 = vmul.f32 %v669, 1.442695
      %v676 = vpow.pop %v675
      %v677 = vmul.f32 %v670, 1.442695
      %v678 = vpow.pop %v677
      %v679 = vsel %vm654, %v672, 0.0
      %680 = vadd.xlane.f32.xlu0 %v679
      %v681 = vpop.xlane.xlu0 %680
      %v682 = vsel %vm654, %v674, 0.0
      %683 = vadd.xlane.f32.xlu0 %v682
      %v684 = vpop.xlane.xlu0 %683
      %v685 = vsel %vm654, %v676, 0.0
      %686 = vadd.xlane.f32.xlu0 %v685
      %v687 = vpop.xlane.xlu0 %686
      %v688 = vsel %vm654, %v678, 0.0
      %689 = vadd.xlane.f32.xlu0 %v688
      %v690 = vpop.xlane.xlu0 %689
      %v691 = vrcp.pop %v681
      %v692 = vrcp.pop %v684
      %v693 = vrcp.pop %v687
      %v694 = vrcp.pop %v690
      %v695 = vmul.f32 %v672, %v691
      %v696 = vmul.f32 %v674, %v692
      %v697 = vmul.f32 %v676, %v693
      %v698 = vmul.f32 %v678, %v694
      %v700 = vsel %vm654, %v695, 0
      %702 = vmatprep.subr.mxu0 0.0
      %703 = vmatpush1.msra.mxu0 0.0
      %704 = vmatprep.subr.mxu0 0.0
      %705 = vmatpush1.msra.mxu0 0.0
      %706 = vmatprep.subr.mxu0 0.0
      %707 = vmatpush1.msra.mxu0 0.0
      %708 = vmatprep.subr.mxu0 0.0
      %709 = vmatpush1.msra.mxu0 0.0
      %710 = vmatprep.subr.mxu0 0.0
      %711 = vmatpush1.msra.mxu0 0.0
      %712 = vmatprep.subr.mxu0 0.0
      %713 = vmatpush1.msra.mxu0 0.0
      %714 = vmatprep.subr.mxu0 0.0
      %715 = vmatpush1.msra.mxu0 0.0
      %716 = vmatprep.subr.mxu0 0.0
      %717 = vmatpush1.msra.mxu0 0.0
      %718 = vmatprep.subr.mxu0 0.0
      %719 = vmatpush1.msra.mxu0 0.0
      %720 = vmatprep.subr.mxu0 0.0
      %721 = vmatpush1.msra.mxu0 0.0
      %722 = vmatprep.subr.mxu0 0.0
      %723 = vmatpush1.msra.mxu0 0.0
      %724 = vmatprep.subr.mxu0 0.0
      %725 = vmatpush1.msra.mxu0 0.0
      %726 = vmatprep.subr.mxu0 0.0
      %727 = vmatpush1.msra.mxu0 0.0
      %728 = vmatprep.subr.mxu0 0.0
      %729 = vmatpush1.msra.mxu0 0.0
      %730 = vmatprep.subr.mxu0 0.0
      %731 = vmatpush1.msra.mxu0 0.0
      %732 = vmatprep.subr.mxu0 0.0
      %733 = vmatpush1.msra.mxu0 %v337
      %734 = vmatprep.subr.mxu0 0.0
      %735 = vmatpush2.msra.mxu0 0.0
      %736 = vmatprep.subr.mxu0 0.0
      %737 = vmatpush2.msra.mxu0 0.0
      %738 = vmatprep.subr.mxu0 0.0
      %739 = vmatpush2.msra.mxu0 0.0
      %740 = vmatprep.subr.mxu0 0.0
      %741 = vmatpush2.msra.mxu0 0.0
      %742 = vmatprep.subr.mxu0 0.0
      %743 = vmatpush2.msra.mxu0 0.0
      %744 = vmatprep.subr.mxu0 0.0
      %745 = vmatpush2.msra.mxu0 0.0
      %746 = vmatprep.subr.mxu0 0.0
      %747 = vmatpush2.msra.mxu0 0.0
      %748 = vmatprep.subr.mxu0 0.0
      %749 = vmatpush2.msra.mxu0 0.0
      %750 = vmatprep.subr.mxu0 0.0
      %751 = vmatpush2.msra.mxu0 0.0
      %752 = vmatprep.subr.mxu0 0.0
      %753 = vmatpush2.msra.mxu0 0.0
      %754 = vmatprep.subr.mxu0 0.0
      %755 = vmatpush2.msra.mxu0 0.0
      %756 = vmatprep.subr.mxu0 0.0
      %757 = vmatpush2.msra.mxu0 0.0
      %758 = vmatprep.subr.mxu0 0.0
      %759 = vmatpush2.msra.mxu0 0.0
      %760 = vmatprep.subr.mxu0 0.0
      %761 = vmatpush2.msra.mxu0 0.0
      %762 = vmatprep.subr.mxu0 0.0
      %763 = vmatpush2.msra.mxu0 0.0
      %764 = vmatprep.subr.mxu0 0.0
      %765 = vmatpush2.msra.mxu0 0.0
      %766 = vmatprep.mubr.f32.mxu0 0.0
      %767 = vmatmul.mubr.f32.gmra.mxu0 %v700
      %v768 = vpop.f32.mrf.mxu0
      %v769 = vadd.f32 0.0, %v768
      %v770 = vpop.f32.mrf.mxu0
      %771 = vdwg.mxu0
      %v772 = vld [vmem:[%s1 + $0x40] sm:$0xff]
      %v773 = vld [vmem:[%s1 + $0x50] sm:$0xff]
      %775 = vrot.lane.b32.xlu0 %v337, 112
      %v776 = vpop.permute.xlu0 %775
      %v779 = vsel %vm654, %v696, 0
      %781 = vmatprep.subr.mxu0 0.0
      %782 = vmatpush1.msra.mxu0 0.0
      %783 = vmatprep.subr.mxu0 0.0
      %784 = vmatpush1.msra.mxu0 0.0
      %785 = vmatprep.subr.mxu0 0.0
      %786 = vmatpush1.msra.mxu0 0.0
      %787 = vmatprep.subr.mxu0 0.0
      %788 = vmatpush1.msra.mxu0 0.0
      %789 = vmatprep.subr.mxu0 0.0
      %790 = vmatpush1.msra.mxu0 0.0
      %791 = vmatprep.subr.mxu0 0.0
      %792 = vmatpush1.msra.mxu0 0.0
      %793 = vmatprep.subr.mxu0 0.0
      %794 = vmatpush1.msra.mxu0 0.0
      %795 = vmatprep.subr.mxu0 0.0
      %796 = vmatpush1.msra.mxu0 0.0
      %797 = vmatprep.subr.mxu0 0.0
      %798 = vmatpush1.msra.mxu0 0.0
      %799 = vmatprep.subr.mxu0 0.0
      %800 = vmatpush1.msra.mxu0 0.0
      %801 = vmatprep.subr.mxu0 0.0
      %802 = vmatpush1.msra.mxu0 0.0
      %803 = vmatprep.subr.mxu0 0.0
      %804 = vmatpush1.msra.mxu0 0.0
      %805 = vmatprep.subr.mxu0 0.0
      %806 = vmatpush1.msra.mxu0 0.0
      %807 = vmatprep.subr.mxu0 0.0
      %808 = vmatpush1.msra.mxu0 0.0
      %809 = vmatprep.subr.mxu0 0.0
      %810 = vmatpush1.msra.mxu0 0.0
      %811 = vmatprep.subr.mxu0 0.0
      %812 = vmatpush1.msra.mxu0 %v776
      %813 = vmatprep.subr.mxu0 0.0
      %814 = vmatpush2.msra.mxu0 0.0
      %815 = vmatprep.subr.mxu0 0.0
      %816 = vmatpush2.msra.mxu0 0.0
      %817 = vmatprep.subr.mxu0 0.0
      %818 = vmatpush2.msra.mxu0 0.0
      %819 = vmatprep.subr.mxu0 0.0
      %820 = vmatpush2.msra.mxu0 0.0
      %821 = vmatprep.subr.mxu0 0.0
      %822 = vmatpush2.msra.mxu0 0.0
      %823 = vmatprep.subr.mxu0 0.0
      %824 = vmatpush2.msra.mxu0 0.0
      %825 = vmatprep.subr.mxu0 0.0
      %826 = vmatpush2.msra.mxu0 0.0
      %827 = vmatprep.subr.mxu0 0.0
      %828 = vmatpush2.msra.mxu0 0.0
      %829 = vmatprep.subr.mxu0 0.0
      %830 = vmatpush2.msra.mxu0 0.0
      %831 = vmatprep.subr.mxu0 0.0
      %832 = vmatpush2.msra.mxu0 0.0
      %833 = vmatprep.subr.mxu0 0.0
      %834 = vmatpush2.msra.mxu0 0.0
      %835 = vmatprep.subr.mxu0 0.0
      %836 = vmatpush2.msra.mxu0 0.0
      %837 = vmatprep.subr.mxu0 0.0
      %838 = vmatpush2.msra.mxu0 0.0
      %839 = vmatprep.subr.mxu0 0.0
      %840 = vmatpush2.msra.mxu0 0.0
      %841 = vmatprep.subr.mxu0 0.0
      %842 = vmatpush2.msra.mxu0 0.0
      %843 = vmatprep.subr.mxu0 0.0
      %844 = vmatpush2.msra.mxu0 0.0
      %845 = vmatprep.mubr.f32.mxu0 0.0
      %846 = vmatmul.mubr.f32.gmra.mxu0 %v779
      %v847 = vpop.f32.mrf.mxu0
      %v848 = vadd.f32 0.0, %v847
      %v849 = vpop.f32.mrf.mxu0
      %850 = vdwg.mxu0
      %v851 = vld [vmem:[%s1 + $0x60] sm:$0xff]
      %v852 = vld [vmem:[%s1 + $0x70] sm:$0xff]
      %v854 = vsel %vm183, %v848, 0
      %856 = vmatprep.subr.mxu0 0.0
      %857 = vmatpush1.msra.mxu0 0.0
      %858 = vmatprep.subr.mxu0 0.0
      %859 = vmatpush1.msra.mxu0 0.0
      %860 = vmatprep.subr.mxu0 0.0
      %861 = vmatpush1.msra.mxu0 0.0
      %862 = vmatprep.subr.mxu0 0.0
      %863 = vmatpush1.msra.mxu0 0.0
      %864 = vmatprep.subr.mxu0 0.0
      %865 = vmatpush1.msra.mxu0 0.0
      %866 = vmatprep.subr.mxu0 0.0
      %867 = vmatpush1.msra.mxu0 0.0
      %868 = vmatprep.subr.mxu0 0.0
      %869 = vmatpush1.msra.mxu0 0.0
      %870 = vmatprep.subr.mxu0 0.0
      %871 = vmatpush1.msra.mxu0 0.0
      %872 = vmatprep.subr.mxu0 0.0
      %873 = vmatpush1.msra.mxu0 0.0
      %874 = vmatprep.subr.mxu0 0.0
      %875 = vmatpush1.msra.mxu0 0.0
      %876 = vmatprep.subr.mxu0 0.0
      %877 = vmatpush1.msra.mxu0 0.0
      %878 = vmatprep.subr.mxu0 0.0
      %879 = vmatpush1.msra.mxu0 0.0
      %880 = vmatprep.subr.mxu0 0.0
      %881 = vmatpush1.msra.mxu0 0.0
      %882 = vmatprep.subr.mxu0 0.0
      %883 = vmatpush1.msra.mxu0 0.0
      %884 = vmatprep.subr.mxu0 0.0
      %885 = vmatpush1.msra.mxu0 %v852
      %886 = vmatprep.subr.mxu0 0.0
      %887 = vmatpush1.msra.mxu0 %v851
      %888 = vmatprep.subr.mxu0 0.0
      %889 = vmatpush2.msra.mxu0 0.0
      %890 = vmatprep.subr.mxu0 0.0
      %891 = vmatpush2.msra.mxu0 0.0
      %892 = vmatprep.subr.mxu0 0.0
      %893 = vmatpush2.msra.mxu0 0.0
      %894 = vmatprep.subr.mxu0 0.0
      %895 = vmatpush2.msra.mxu0 0.0
      %896 = vmatprep.subr.mxu0 0.0
      %897 = vmatpush2.msra.mxu0 0.0
      %898 = vmatprep.subr.mxu0 0.0
      %899 = vmatpush2.msra.mxu0 0.0
      %900 = vmatprep.subr.mxu0 0.0
      %901 = vmatpush2.msra.mxu0 0.0
      %902 = vmatprep.subr.mxu0 0.0
      %903 = vmatpush2.msra.mxu0 0.0
      %904 = vmatprep.subr.mxu0 0.0
      %905 = vmatpush2.msra.mxu0 0.0
      %906 = vmatprep.subr.mxu0 0.0
      %907 = vmatpush2.msra.mxu0 0.0
      %908 = vmatprep.subr.mxu0 0.0
      %909 = vmatpush2.msra.mxu0 0.0
      %910 = vmatprep.subr.mxu0 0.0
      %911 = vmatpush2.msra.mxu0 0.0
      %912 = vmatprep.subr.mxu0 0.0
      %913 = vmatpush2.msra.mxu0 0.0
      %914 = vmatprep.subr.mxu0 0.0
      %915 = vmatpush2.msra.mxu0 0.0
      %916 = vmatprep.subr.mxu0 0.0
      %917 = vmatpush2.msra.mxu0 0.0
      %918 = vmatprep.subr.mxu0 0.0
      %919 = vmatpush2.msra.mxu0 0.0
      %920 = vmatprep.mubr.f32.mxu0 0.0
      %921 = vmatmul.mubr.f32.gmra.mxu0 %v854
      %v922 = vpop.f32.mrf.mxu0
      %v923 = vadd.f32 0.0, %v922
      %v924 = vpop.f32.mrf.mxu0
      %925 = vdwg.mxu0
      %926 = vrot.lane.b32.xlu0 %v337, 96
      %v927 = vpop.permute.xlu0 %926
      %v930 = vsel %vm654, %v697, 0
      %932 = vmatprep.subr.mxu0 0.0
      %933 = vmatpush1.msra.mxu0 0.0
      %934 = vmatprep.subr.mxu0 0.0
      %935 = vmatpush1.msra.mxu0 0.0
      %936 = vmatprep.subr.mxu0 0.0
      %937 = vmatpush1.msra.mxu0 0.0
      %938 = vmatprep.subr.mxu0 0.0
      %939 = vmatpush1.msra.mxu0 0.0
      %940 = vmatprep.subr.mxu0 0.0
      %941 = vmatpush1.msra.mxu0 0.0
      %942 = vmatprep.subr.mxu0 0.0
      %943 = vmatpush1.msra.mxu0 0.0
      %944 = vmatprep.subr.mxu0 0.0
      %945 = vmatpush1.msra.mxu0 0.0
      %946 = vmatprep.subr.mxu0 0.0
      %947 = vmatpush1.msra.mxu0 0.0
      %948 = vmatprep.subr.mxu0 0.0
      %949 = vmatpush1.msra.mxu0 0.0
      %950 = vmatprep.subr.mxu0 0.0
      %951 = vmatpush1.msra.mxu0 0.0
      %952 = vmatprep.subr.mxu0 0.0
      %953 = vmatpush1.msra.mxu0 0.0
      %954 = vmatprep.subr.mxu0 0.0
      %955 = vmatpush1.msra.mxu0 0.0
      %956 = vmatprep.subr.mxu0 0.0
      %957 = vmatpush1.msra.mxu0 0.0
      %958 = vmatprep.subr.mxu0 0.0
      %959 = vmatpush1.msra.mxu0 0.0
      %960 = vmatprep.subr.mxu0 0.0
      %961 = vmatpush1.msra.mxu0 0.0
      %962 = vmatprep.subr.mxu0 0.0
      %963 = vmatpush1.msra.mxu0 %v927
      %964 = vmatprep.subr.mxu0 0.0
      %965 = vmatpush2.msra.mxu0 0.0
      %966 = vmatprep.subr.mxu0 0.0
      %967 = vmatpush2.msra.mxu0 0.0
      %968 = vmatprep.subr.mxu0 0.0
      %969 = vmatpush2.msra.mxu0 0.0
      %970 = vmatprep.subr.mxu0 0.0
      %971 = vmatpush2.msra.mxu0 0.0
      %972 = vmatprep.subr.mxu0 0.0
      %973 = vmatpush2.msra.mxu0 0.0
      %974 = vmatprep.subr.mxu0 0.0
      %975 = vmatpush2.msra.mxu0 0.0
      %976 = vmatprep.subr.mxu0 0.0
      %977 = vmatpush2.msra.mxu0 0.0
      %978 = vmatprep.subr.mxu0 0.0
      %979 = vmatpush2.msra.mxu0 0.0
      %980 = vmatprep.subr.mxu0 0.0
      %981 = vmatpush2.msra.mxu0 0.0
      %982 = vmatprep.subr.mxu0 0.0
      %983 = vmatpush2.msra.mxu0 0.0
      %984 = vmatprep.subr.mxu0 0.0
      %985 = vmatpush2.msra.mxu0 0.0
      %986 = vmatprep.subr.mxu0 0.0
      %987 = vmatpush2.msra.mxu0 0.0
      %988 = vmatprep.subr.mxu0 0.0
      %989 = vmatpush2.msra.mxu0 0.0
      %990 = vmatprep.subr.mxu0 0.0
      %991 = vmatpush2.msra.mxu0 0.0
      %992 = vmatprep.subr.mxu0 0.0
      %993 = vmatpush2.msra.mxu0 0.0
      %994 = vmatprep.subr.mxu0 0.0
      %995 = vmatpush2.msra.mxu0 0.0
      %996 = vmatprep.mubr.f32.mxu0 0.0
      %997 = vmatmul.mubr.f32.gmra.mxu0 %v930
      %v998 = vpop.f32.mrf.mxu0
      %v999 = vadd.f32 0.0, %v998
      %v1000 = vpop.f32.mrf.mxu0
      %1001 = vdwg.mxu0
      %v1002 = vld [vmem:[%s1 + $0x80] sm:$0xff]
      %v1003 = vld [vmem:[%s1 + $0x90] sm:$0xff]
      %1004 = vrot.lane.b32.xlu0 %v337, 80
      %v1005 = vpop.permute.xlu0 %1004
      %v1008 = vsel %vm654, %v698, 0
      %1010 = vmatprep.subr.mxu0 0.0
      %1011 = vmatpush1.msra.mxu0 0.0
      %1012 = vmatprep.subr.mxu0 0.0
      %1013 = vmatpush1.msra.mxu0 0.0
      %1014 = vmatprep.subr.mxu0 0.0
      %1015 = vmatpush1.msra.mxu0 0.0
      %1016 = vmatprep.subr.mxu0 0.0
      %1017 = vmatpush1.msra.mxu0 0.0
      %1018 = vmatprep.subr.mxu0 0.0
      %1019 = vmatpush1.msra.mxu0 0.0
      %1020 = vmatprep.subr.mxu0 0.0
      %1021 = vmatpush1.msra.mxu0 0.0
      %1022 = vmatprep.subr.mxu0 0.0
      %1023 = vmatpush1.msra.mxu0 0.0
      %1024 = vmatprep.subr.mxu0 0.0
      %1025 = vmatpush1.msra.mxu0 0.0
      %1026 = vmatprep.subr.mxu0 0.0
      %1027 = vmatpush1.msra.mxu0 0.0
      %1028 = vmatprep.subr.mxu0 0.0
      %1029 = vmatpush1.msra.mxu0 0.0
      %1030 = vmatprep.subr.mxu0 0.0
      %1031 = vmatpush1.msra.mxu0 0.0
      %1032 = vmatprep.subr.mxu0 0.0
      %1033 = vmatpush1.msra.mxu0 0.0
      %1034 = vmatprep.subr.mxu0 0.0
      %1035 = vmatpush1.msra.mxu0 0.0
      %1036 = vmatprep.subr.mxu0 0.0
      %1037 = vmatpush1.msra.mxu0 0.0
      %1038 = vmatprep.subr.mxu0 0.0
      %1039 = vmatpush1.msra.mxu0 0.0
      %1040 = vmatprep.subr.mxu0 0.0
      %1041 = vmatpush1.msra.mxu0 %v1005
      %1042 = vmatprep.subr.mxu0 0.0
      %1043 = vmatpush2.msra.mxu0 0.0
      %1044 = vmatprep.subr.mxu0 0.0
      %1045 = vmatpush2.msra.mxu0 0.0
      %1046 = vmatprep.subr.mxu0 0.0
      %1047 = vmatpush2.msra.mxu0 0.0
      %1048 = vmatprep.subr.mxu0 0.0
      %1049 = vmatpush2.msra.mxu0 0.0
      %1050 = vmatprep.subr.mxu0 0.0
      %1051 = vmatpush2.msra.mxu0 0.0
      %1052 = vmatprep.subr.mxu0 0.0
      %1053 = vmatpush2.msra.mxu0 0.0
      %1054 = vmatprep.subr.mxu0 0.0
      %1055 = vmatpush2.msra.mxu0 0.0
      %1056 = vmatprep.subr.mxu0 0.0
      %1057 = vmatpush2.msra.mxu0 0.0
      %1058 = vmatprep.subr.mxu0 0.0
      %1059 = vmatpush2.msra.mxu0 0.0
      %1060 = vmatprep.subr.mxu0 0.0
      %1061 = vmatpush2.msra.mxu0 0.0
      %1062 = vmatprep.subr.mxu0 0.0
      %1063 = vmatpush2.msra.mxu0 0.0
      %1064 = vmatprep.subr.mxu0 0.0
      %1065 = vmatpush2.msra.mxu0 0.0
      %1066 = vmatprep.subr.mxu0 0.0
      %1067 = vmatpush2.msra.mxu0 0.0
      %1068 = vmatprep.subr.mxu0 0.0
      %1069 = vmatpush2.msra.mxu0 0.0
      %1070 = vmatprep.subr.mxu0 0.0
      %1071 = vmatpush2.msra.mxu0 0.0
      %1072 = vmatprep.subr.mxu0 0.0
      %1073 = vmatpush2.msra.mxu0 0.0
      %1074 = vmatprep.mubr.f32.mxu0 0.0
      %1075 = vmatmul.mubr.f32.gmra.mxu0 %v1008
      %v1076 = vpop.f32.mrf.mxu0
      %v1077 = vadd.f32 0.0, %v1076
      %v1078 = vpop.f32.mrf.mxu0
      %1079 = vdwg.mxu0
      %v1080 = vld [vmem:[%s1 + $0xa0] sm:$0xff]
      %v1081 = vld [vmem:[%s1 + $0xb0] sm:$0xff]
      %v1083 = vsel %vm183, %v1077, 0
      %1085 = vmatprep.subr.mxu0 0.0
      %1086 = vmatpush1.msra.mxu0 0.0
      %1087 = vmatprep.subr.mxu0 0.0
      %1088 = vmatpush1.msra.mxu0 0.0
      %1089 = vmatprep.subr.mxu0 0.0
      %1090 = vmatpush1.msra.mxu0 0.0
      %1091 = vmatprep.subr.mxu0 0.0
      %1092 = vmatpush1.msra.mxu0 0.0
      %1093 = vmatprep.subr.mxu0 0.0
      %1094 = vmatpush1.msra.mxu0 0.0
      %1095 = vmatprep.subr.mxu0 0.0
      %1096 = vmatpush1.msra.mxu0 0.0
      %1097 = vmatprep.subr.mxu0 0.0
      %1098 = vmatpush1.msra.mxu0 0.0
      %1099 = vmatprep.subr.mxu0 0.0
      %1100 = vmatpush1.msra.mxu0 0.0
      %1101 = vmatprep.subr.mxu0 0.0
      %1102 = vmatpush1.msra.mxu0 0.0
      %1103 = vmatprep.subr.mxu0 0.0
      %1104 = vmatpush1.msra.mxu0 0.0
      %1105 = vmatprep.subr.mxu0 0.0
      %1106 = vmatpush1.msra.mxu0 0.0
      %1107 = vmatprep.subr.mxu0 0.0
      %1108 = vmatpush1.msra.mxu0 0.0
      %1109 = vmatprep.subr.mxu0 0.0
      %1110 = vmatpush1.msra.mxu0 0.0
      %1111 = vmatprep.subr.mxu0 0.0
      %1112 = vmatpush1.msra.mxu0 0.0
      %1113 = vmatprep.subr.mxu0 0.0
      %1114 = vmatpush1.msra.mxu0 %v1081
      %1115 = vmatprep.subr.mxu0 0.0
      %1116 = vmatpush1.msra.mxu0 %v1080
      %1117 = vmatprep.subr.mxu0 0.0
      %1118 = vmatpush2.msra.mxu0 0.0
      %1119 = vmatprep.subr.mxu0 0.0
      %1120 = vmatpush2.msra.mxu0 0.0
      %1121 = vmatprep.subr.mxu0 0.0
      %1122 = vmatpush2.msra.mxu0 0.0
      %1123 = vmatprep.subr.mxu0 0.0
      %1124 = vmatpush2.msra.mxu0 0.0
      %1125 = vmatprep.subr.mxu0 0.0
      %1126 = vmatpush2.msra.mxu0 0.0
      %1127 = vmatprep.subr.mxu0 0.0
      %1128 = vmatpush2.msra.mxu0 0.0
      %1129 = vmatprep.subr.mxu0 0.0
      %1130 = vmatpush2.msra.mxu0 0.0
      %1131 = vmatprep.subr.mxu0 0.0
      %1132 = vmatpush2.msra.mxu0 0.0
      %1133 = vmatprep.subr.mxu0 0.0
      %1134 = vmatpush2.msra.mxu0 0.0
      %1135 = vmatprep.subr.mxu0 0.0
      %1136 = vmatpush2.msra.mxu0 0.0
      %1137 = vmatprep.subr.mxu0 0.0
      %1138 = vmatpush2.msra.mxu0 0.0
      %1139 = vmatprep.subr.mxu0 0.0
      %1140 = vmatpush2.msra.mxu0 0.0
      %1141 = vmatprep.subr.mxu0 0.0
      %1142 = vmatpush2.msra.mxu0 0.0
      %1143 = vmatprep.subr.mxu0 0.0
      %1144 = vmatpush2.msra.mxu0 0.0
      %1145 = vmatprep.subr.mxu0 0.0
      %1146 = vmatpush2.msra.mxu0 0.0
      %1147 = vmatprep.subr.mxu0 0.0
      %1148 = vmatpush2.msra.mxu0 0.0
      %1149 = vmatprep.mubr.f32.mxu0 0.0
      %1150 = vmatmul.mubr.f32.gmra.mxu0 %v1083
      %v1151 = vpop.f32.mrf.mxu0
      %v1152 = vadd.f32 0.0, %v1151
      %v1153 = vpop.f32.mrf.mxu0
      %1154 = vdwg.mxu0
      %v1156 = vsel %vm183, %v769, 0
      %1158 = vmatprep.subr.mxu0 0.0
      %1159 = vmatpush1.msra.mxu0 0.0
      %1160 = vmatprep.subr.mxu0 0.0
      %1161 = vmatpush1.msra.mxu0 0.0
      %1162 = vmatprep.subr.mxu0 0.0
      %1163 = vmatpush1.msra.mxu0 0.0
      %1164 = vmatprep.subr.mxu0 0.0
      %1165 = vmatpush1.msra.mxu0 0.0
      %1166 = vmatprep.subr.mxu0 0.0
      %1167 = vmatpush1.msra.mxu0 0.0
      %1168 = vmatprep.subr.mxu0 0.0
      %1169 = vmatpush1.msra.mxu0 0.0
      %1170 = vmatprep.subr.mxu0 0.0
      %1171 = vmatpush1.msra.mxu0 0.0
      %1172 = vmatprep.subr.mxu0 0.0
      %1173 = vmatpush1.msra.mxu0 0.0
      %1174 = vmatprep.subr.mxu0 0.0
      %1175 = vmatpush1.msra.mxu0 0.0
      %1176 = vmatprep.subr.mxu0 0.0
      %1177 = vmatpush1.msra.mxu0 0.0
      %1178 = vmatprep.subr.mxu0 0.0
      %1179 = vmatpush1.msra.mxu0 0.0
      %1180 = vmatprep.subr.mxu0 0.0
      %1181 = vmatpush1.msra.mxu0 0.0
      %1182 = vmatprep.subr.mxu0 0.0
      %1183 = vmatpush1.msra.mxu0 0.0
      %1184 = vmatprep.subr.mxu0 0.0
      %1185 = vmatpush1.msra.mxu0 0.0
      %1186 = vmatprep.subr.mxu0 0.0
      %1187 = vmatpush1.msra.mxu0 %v773
      %1188 = vmatprep.subr.mxu0 0.0
      %1189 = vmatpush1.msra.mxu0 %v772
      %1190 = vmatprep.subr.mxu0 0.0
      %1191 = vmatpush2.msra.mxu0 0.0
      %1192 = vmatprep.subr.mxu0 0.0
      %1193 = vmatpush2.msra.mxu0 0.0
      %1194 = vmatprep.subr.mxu0 0.0
      %1195 = vmatpush2.msra.mxu0 0.0
      %1196 = vmatprep.subr.mxu0 0.0
      %1197 = vmatpush2.msra.mxu0 0.0
      %1198 = vmatprep.subr.mxu0 0.0
      %1199 = vmatpush2.msra.mxu0 0.0
      %1200 = vmatprep.subr.mxu0 0.0
      %1201 = vmatpush2.msra.mxu0 0.0
      %1202 = vmatprep.subr.mxu0 0.0
      %1203 = vmatpush2.msra.mxu0 0.0
      %1204 = vmatprep.subr.mxu0 0.0
      %1205 = vmatpush2.msra.mxu0 0.0
      %1206 = vmatprep.subr.mxu0 0.0
      %1207 = vmatpush2.msra.mxu0 0.0
      %1208 = vmatprep.subr.mxu0 0.0
      %1209 = vmatpush2.msra.mxu0 0.0
      %1210 = vmatprep.subr.mxu0 0.0
      %1211 = vmatpush2.msra.mxu0 0.0
      %1212 = vmatprep.subr.mxu0 0.0
      %1213 = vmatpush2.msra.mxu0 0.0
      %1214 = vmatprep.subr.mxu0 0.0
      %1215 = vmatpush2.msra.mxu0 0.0
      %1216 = vmatprep.subr.mxu0 0.0
      %1217 = vmatpush2.msra.mxu0 0.0
      %1218 = vmatprep.subr.mxu0 0.0
      %1219 = vmatpush2.msra.mxu0 0.0
      %1220 = vmatprep.subr.mxu0 0.0
      %1221 = vmatpush2.msra.mxu0 0.0
      %1222 = vmatprep.mubr.f32.mxu0 0.0
      %1223 = vmatmul.mubr.f32.gmra.mxu0 %v1156
      %v1224 = vpop.f32.mrf.mxu0
      %v1225 = vadd.f32 %v923, %v1224
      %v1226 = vpop.f32.mrf.mxu0
      %1227 = vdwg.mxu0
      %v1229 = vsel %vm183, %v999, 0
      %1231 = vmatprep.subr.mxu0 0.0
      %1232 = vmatpush1.msra.mxu0 0.0
      %1233 = vmatprep.subr.mxu0 0.0
      %1234 = vmatpush1.msra.mxu0 0.0
      %1235 = vmatprep.subr.mxu0 0.0
      %1236 = vmatpush1.msra.mxu0 0.0
      %1237 = vmatprep.subr.mxu0 0.0
      %1238 = vmatpush1.msra.mxu0 0.0
      %1239 = vmatprep.subr.mxu0 0.0
      %1240 = vmatpush1.msra.mxu0 0.0
      %1241 = vmatprep.subr.mxu0 0.0
      %1242 = vmatpush1.msra.mxu0 0.0
      %1243 = vmatprep.subr.mxu0 0.0
      %1244 = vmatpush1.msra.mxu0 0.0
      %1245 = vmatprep.subr.mxu0 0.0
      %1246 = vmatpush1.msra.mxu0 0.0
      %1247 = vmatprep.subr.mxu0 0.0
      %1248 = vmatpush1.msra.mxu0 0.0
      %1249 = vmatprep.subr.mxu0 0.0
      %1250 = vmatpush1.msra.mxu0 0.0
      %1251 = vmatprep.subr.mxu0 0.0
      %1252 = vmatpush1.msra.mxu0 0.0
      %1253 = vmatprep.subr.mxu0 0.0
      %1254 = vmatpush1.msra.mxu0 0.0
      %1255 = vmatprep.subr.mxu0 0.0
      %1256 = vmatpush1.msra.mxu0 0.0
      %1257 = vmatprep.subr.mxu0 0.0
      %1258 = vmatpush1.msra.mxu0 0.0
      %1259 = vmatprep.subr.mxu0 0.0
      %1260 = vmatpush1.msra.mxu0 %v1003
      %1261 = vmatprep.subr.mxu0 0.0
      %1262 = vmatpush1.msra.mxu0 %v1002
      %1263 = vmatprep.subr.mxu0 0.0
      %1264 = vmatpush2.msra.mxu0 0.0
      %1265 = vmatprep.subr.mxu0 0.0
      %1266 = vmatpush2.msra.mxu0 0.0
      %1267 = vmatprep.subr.mxu0 0.0
      %1268 = vmatpush2.msra.mxu0 0.0
      %1269 = vmatprep.subr.mxu0 0.0
      %1270 = vmatpush2.msra.mxu0 0.0
      %1271 = vmatprep.subr.mxu0 0.0
      %1272 = vmatpush2.msra.mxu0 0.0
      %1273 = vmatprep.subr.mxu0 0.0
      %1274 = vmatpush2.msra.mxu0 0.0
      %1275 = vmatprep.subr.mxu0 0.0
      %1276 = vmatpush2.msra.mxu0 0.0
      %1277 = vmatprep.subr.mxu0 0.0
      %1278 = vmatpush2.msra.mxu0 0.0
      %1279 = vmatprep.subr.mxu0 0.0
      %1280 = vmatpush2.msra.mxu0 0.0
      %1281 = vmatprep.subr.mxu0 0.0
      %1282 = vmatpush2.msra.mxu0 0.0
      %1283 = vmatprep.subr.mxu0 0.0
      %1284 = vmatpush2.msra.mxu0 0.0
      %1285 = vmatprep.subr.mxu0 0.0
      %1286 = vmatpush2.msra.mxu0 0.0
      %1287 = vmatprep.subr.mxu0 0.0
      %1288 = vmatpush2.msra.mxu0 0.0
      %1289 = vmatprep.subr.mxu0 0.0
      %1290 = vmatpush2.msra.mxu0 0.0
      %1291 = vmatprep.subr.mxu0 0.0
      %1292 = vmatpush2.msra.mxu0 0.0
      %1293 = vmatprep.subr.mxu0 0.0
      %1294 = vmatpush2.msra.mxu0 0.0
      %1295 = vmatprep.mubr.f32.mxu0 0.0
      %1296 = vmatmul.mubr.f32.gmra.mxu0 %v1229
      %v1297 = vpop.f32.mrf.mxu0
      %v1298 = vadd.f32 %v1152, %v1297
      %v1299 = vpop.f32.mrf.mxu0
      %1300 = vdwg.mxu0
      %v1301 = vadd.f32 %v1225, %v1298
      %v1302 = vadd.f32 %v1301, %v169
      %v1303 = vadd.f32 %v254, %v1302
      %vm1304 = vcmask 523264
      %v1305 = vsel %vm1304, %v1303, 0.0
      %1306 = vadd.xlane.f32.xlu0 %v1305
      %v1307 = vpop.xlane.xlu0 %1306
      %v1308 = vrcp.pop 64.0
      %v1309 = vmul.f32 %v1307, %v1308
      %v1310 = vsub.f32 %v1303, %v1309
      %v1311 = vmul.f32 %v1310, %v1310
      %v1312 = vsel %vm1304, %v1311, 0.0
      %1313 = vadd.xlane.f32.xlu0 %v1312
      %v1314 = vpop.xlane.xlu0 %1313
      %v1315 = vmul.f32 %v1314, %v1308
      %v1316 = vadd.f32 %v1315, 1e-05
      %v1317 = vrsqrt.pop %v1316
      %v1318 = vmul.f32 %v1310, %v1317
      %v1319 = vmul.f32 %v1318, %v170
      %v1320 = vadd.f32 %v1319, %v171
      %v1321 = vld [vmem:[%s1 + $0xc0] sm:$0xff]
      %v1322 = vld [vmem:[%s1 + $0xd0] sm:$0xff]
      %v1323 = vld [vmem:[%s1 + $0xe0] sm:$0xff]
      %v1324 = vld [vmem:[%s1 + $0xf0] sm:$0xff]
      %v1325 = vld [vmem:[%s1 + $0x100] sm:$0xff]
      %v1326 = vld [vmem:[%s1 + $0x110] sm:$0xff]
      %v1327 = vld [vmem:[%s1 + $0x120] sm:$0xff]
      %v1328 = vld [vmem:[%s1 + $0x130] sm:$0xff]
      %v1330 = vsel %vm1304, %v1320, 0
      %1332 = vmatprep.subr.mxu0 0.0
      %1333 = vmatpush1.msra.mxu0 0.0
      %1334 = vmatprep.subr.mxu0 0.0
      %1335 = vmatpush1.msra.mxu0 0.0
      %1336 = vmatprep.subr.mxu0 0.0
      %1337 = vmatpush1.msra.mxu0 0.0
      %1338 = vmatprep.subr.mxu0 0.0
      %1339 = vmatpush1.msra.mxu0 0.0
      %1340 = vmatprep.subr.mxu0 0.0
      %1341 = vmatpush1.msra.mxu0 0.0
      %1342 = vmatprep.subr.mxu0 0.0
      %1343 = vmatpush1.msra.mxu0 0.0
      %1344 = vmatprep.subr.mxu0 0.0
      %1345 = vmatpush1.msra.mxu0 0.0
      %1346 = vmatprep.subr.mxu0 0.0
      %1347 = vmatpush1.msra.mxu0 0.0
      %1348 = vmatprep.subr.mxu0 0.0
      %1349 = vmatpush1.msra.mxu0 %v1328
      %1350 = vmatprep.subr.mxu0 0.0
      %1351 = vmatpush1.msra.mxu0 %v1327
      %1352 = vmatprep.subr.mxu0 0.0
      %1353 = vmatpush1.msra.mxu0 %v1326
      %1354 = vmatprep.subr.mxu0 0.0
      %1355 = vmatpush1.msra.mxu0 %v1325
      %1356 = vmatprep.subr.mxu0 0.0
      %1357 = vmatpush1.msra.mxu0 %v1324
      %1358 = vmatprep.subr.mxu0 0.0
      %1359 = vmatpush1.msra.mxu0 %v1323
      %1360 = vmatprep.subr.mxu0 0.0
      %1361 = vmatpush1.msra.mxu0 %v1322
      %1362 = vmatprep.subr.mxu0 0.0
      %1363 = vmatpush1.msra.mxu0 %v1321
      %1364 = vmatprep.subr.mxu0 0.0
      %1365 = vmatpush2.msra.mxu0 0.0
      %1366 = vmatprep.subr.mxu0 0.0
      %1367 = vmatpush2.msra.mxu0 0.0
      %1368 = vmatprep.subr.mxu0 0.0
      %1369 = vmatpush2.msra.mxu0 0.0
      %1370 = vmatprep.subr.mxu0 0.0
      %1371 = vmatpush2.msra.mxu0 0.0
      %1372 = vmatprep.subr.mxu0 0.0
      %1373 = vmatpush2.msra.mxu0 0.0
      %1374 = vmatprep.subr.mxu0 0.0
      %1375 = vmatpush2.msra.mxu0 0.0
      %1376 = vmatprep.subr.mxu0 0.0
      %1377 = vmatpush2.msra.mxu0 0.0
      %1378 = vmatprep.subr.mxu0 0.0
      %1379 = vmatpush2.msra.mxu0 0.0
      %1380 = vmatprep.subr.mxu0 0.0
      %1381 = vmatpush2.msra.mxu0 0.0
      %1382 = vmatprep.subr.mxu0 0.0
      %1383 = vmatpush2.msra.mxu0 0.0
      %1384 = vmatprep.subr.mxu0 0.0
      %1385 = vmatpush2.msra.mxu0 0.0
      %1386 = vmatprep.subr.mxu0 0.0
      %1387 = vmatpush2.msra.mxu0 0.0
      %1388 = vmatprep.subr.mxu0 0.0
      %1389 = vmatpush2.msra.mxu0 0.0
      %1390 = vmatprep.subr.mxu0 0.0
      %1391 = vmatpush2.msra.mxu0 0.0
      %1392 = vmatprep.subr.mxu0 0.0
      %1393 = vmatpush2.msra.mxu0 0.0
      %1394 = vmatprep.subr.mxu0 0.0
      %1395 = vmatpush2.msra.mxu0 0.0
      %1396 = vmatprep.mubr.f32.mxu0 0.0
      %1397 = vmatmul.mubr.f32.gmra.mxu0 %v1330
      %v1398 = vpop.f32.mrf.mxu0
      %v1399 = vadd.f32 %v172, %v1398
      %v1400 = vpop.f32.mrf.mxu0
      %1401 = vdwg.mxu0
      %v1402 = vmax.f32 %v1399, 0.0
      %v1403 = vld [vmem:[%s1 + $0x140] sm:$0xff]
      %v1404 = vld [vmem:[%s1 + $0x150] sm:$0xff]
      %v1405 = vld [vmem:[%s1 + $0x160] sm:$0xff]
      %v1406 = vld [vmem:[%s1 + $0x170] sm:$0xff]
      %v1407 = vld [vmem:[%s1 + $0x180] sm:$0xff]
      %v1408 = vld [vmem:[%s1 + $0x190] sm:$0xff]
      %v1409 = vld [vmem:[%s1 + $0x1a0] sm:$0xff]
      %v1410 = vld [vmem:[%s1 + $0x1b0] sm:$0xff]
      %v1411 = vld [vmem:[%s1 + $0x1c0] sm:$0xff]
      %v1412 = vld [vmem:[%s1 + $0x1d0] sm:$0xff]
      %v1413 = vld [vmem:[%s1 + $0x1e0] sm:$0xff]
      %v1414 = vld [vmem:[%s1 + $0x1f0] sm:$0xff]
      %v1415 = vld [vmem:[%s1 + $0x200] sm:$0xff]
      %v1416 = vld [vmem:[%s1 + $0x210] sm:$0xff]
      %v1417 = vld [vmem:[%s1 + $0x220] sm:$0xff]
      %v1418 = vld [vmem:[%s1 + $0x230] sm:$0xff]
      %1419 = vmatprep.subr.mxu0 0.0
      %1420 = vmatpush1.msra.mxu0 %v1418
      %1421 = vmatprep.subr.mxu0 0.0
      %1422 = vmatpush1.msra.mxu0 %v1417
      %1423 = vmatprep.subr.mxu0 0.0
      %1424 = vmatpush1.msra.mxu0 %v1416
      %1425 = vmatprep.subr.mxu0 0.0
      %1426 = vmatpush1.msra.mxu0 %v1415
      %1427 = vmatprep.subr.mxu0 0.0
      %1428 = vmatpush1.msra.mxu0 %v1414
      %1429 = vmatprep.subr.mxu0 0.0
      %1430 = vmatpush1.msra.mxu0 %v1413
      %1431 = vmatprep.subr.mxu0 0.0
      %1432 = vmatpush1.msra.mxu0 %v1412
      %1433 = vmatprep.subr.mxu0 0.0
      %1434 = vmatpush1.msra.mxu0 %v1411
      %1435 = vmatprep.subr.mxu0 0.0
      %1436 = vmatpush1.msra.mxu0 %v1410
      %1437 = vmatprep.subr.mxu0 0.0
      %1438 = vmatpush1.msra.mxu0 %v1409
      %1439 = vmatprep.subr.mxu0 0.0
      %1440 = vmatpush1.msra.mxu0 %v1408
      %1441 = vmatprep.subr.mxu0 0.0
      %1442 = vmatpush1.msra.mxu0 %v1407
      %1443 = vmatprep.subr.mxu0 0.0
      %1444 = vmatpush1.msra.mxu0 %v1406
      %1445 = vmatprep.subr.mxu0 0.0
      %1446 = vmatpush1.msra.mxu0 %v1405
      %1447 = vmatprep.subr.mxu0 0.0
      %1448 = vmatpush1.msra.mxu0 %v1404
      %1449 = vmatprep.subr.mxu0 0.0
      %1450 = vmatpush1.msra.mxu0 %v1403
      %1451 = vmatprep.subr.mxu0 0.0
      %1452 = vmatpush2.msra.mxu0 0.0
      %1453 = vmatprep.subr.mxu0 0.0
      %1454 = vmatpush2.msra.mxu0 0.0
      %1455 = vmatprep.subr.mxu0 0.0
      %1456 = vmatpush2.msra.mxu0 0.0
      %1457 = vmatprep.subr.mxu0 0.0
      %1458 = vmatpush2.msra.mxu0 0.0
      %1459 = vmatprep.subr.mxu0 0.0
      %1460 = vmatpush2.msra.mxu0 0.0
      %1461 = vmatprep.subr.mxu0 0.0
      %1462 = vmatpush2.msra.mxu0 0.0
      %1463 = vmatprep.subr.mxu0 0.0
      %1464 = vmatpush2.msra.mxu0 0.0
      %1465 = vmatprep.subr.mxu0 0.0
      %1466 = vmatpush2.msra.mxu0 0.0
      %1467 = vmatprep.subr.mxu0 0.0
      %1468 = vmatpush2.msra.mxu0 0.0
      %1469 = vmatprep.subr.mxu0 0.0
      %1470 = vmatpush2.msra.mxu0 0.0
      %1471 = vmatprep.subr.mxu0 0.0
      %1472 = vmatpush2.msra.mxu0 0.0
      %1473 = vmatprep.subr.mxu0 0.0
      %1474 = vmatpush2.msra.mxu0 0.0
      %1475 = vmatprep.subr.mxu0 0.0
      %1476 = vmatpush2.msra.mxu0 0.0
      %1477 = vmatprep.subr.mxu0 0.0
      %1478 = vmatpush2.msra.mxu0 0.0
      %1479 = vmatprep.subr.mxu0 0.0
      %1480 = vmatpush2.msra.mxu0 0.0
      %1481 = vmatprep.subr.mxu0 0.0
      %1482 = vmatpush2.msra.mxu0 0.0
      %1483 = vmatprep.mubr.f32.mxu0 0.0
      %1484 = vmatmul.mubr.f32.gmra.mxu0 %v1402
      %v1485 = vpop.f32.mrf.mxu0
      %v1486 = vadd.f32 %v173, %v1485
      %v1487 = vpop.f32.mrf.mxu0
      %1488 = vdwg.mxu0
      %v1489 = vadd.f32 %v1320, %v1486
      %v1490 = vsel %vm1304, %v1489, 0.0
      %1491 = vadd.xlane.f32.xlu0 %v1490
      %v1492 = vpop.xlane.xlu0 %1491
      %v1493 = vmul.f32 %v1492, %v1308
      %v1494 = vsub.f32 %v1489, %v1493
      %v1495 = vmul.f32 %v1494, %v1494
      %v1496 = vsel %vm1304, %v1495, 0.0
      %1497 = vadd.xlane.f32.xlu0 %v1496
      %v1498 = vpop.xlane.xlu0 %1497
      %v1499 = vmul.f32 %v1498, %v1308
      %v1500 = vadd.f32 %v1499, 1e-05
      %v1501 = vrsqrt.pop %v1500
      %v1502 = vmul.f32 %v1494, %v1501
      %v1503 = vmul.f32 %v1502, %v174
      %v1504 = vadd.f32 %v1503, %v175
      %v1505 = vld [vmem:[%s1 + $0x240] sm:$0xff]
      %v1506 = vld [vmem:[%s1 + $0x250] sm:$0xff]
      %v1507 = vld [vmem:[%s1 + $0x260] sm:$0xff]
      %v1508 = vld [vmem:[%s1 + $0x270] sm:$0xff]
      %v1509 = vld [vmem:[%s1 + $0x280] sm:$0xff]
      %v1510 = vld [vmem:[%s1 + $0x290] sm:$0xff]
      %v1511 = vld [vmem:[%s1 + $0x2a0] sm:$0xff]
      %v1512 = vld [vmem:[%s1 + $0x2b0] sm:$0xff]
      %v1514 = vsel %vm1304, %v1504, 0
      %1516 = vmatprep.subr.mxu0 0.0
      %1517 = vmatpush1.msra.mxu0 0.0
      %1518 = vmatprep.subr.mxu0 0.0
      %1519 = vmatpush1.msra.mxu0 0.0
      %1520 = vmatprep.subr.mxu0 0.0
      %1521 = vmatpush1.msra.mxu0 0.0
      %1522 = vmatprep.subr.mxu0 0.0
      %1523 = vmatpush1.msra.mxu0 0.0
      %1524 = vmatprep.subr.mxu0 0.0
      %1525 = vmatpush1.msra.mxu0 0.0
      %1526 = vmatprep.subr.mxu0 0.0
      %1527 = vmatpush1.msra.mxu0 0.0
      %1528 = vmatprep.subr.mxu0 0.0
      %1529 = vmatpush1.msra.mxu0 0.0
      %1530 = vmatprep.subr.mxu0 0.0
      %1531 = vmatpush1.msra.mxu0 0.0
      %1532 = vmatprep.subr.mxu0 0.0
      %1533 = vmatpush1.msra.mxu0 %v1512
      %1534 = vmatprep.subr.mxu0 0.0
      %1535 = vmatpush1.msra.mxu0 %v1511
      %1536 = vmatprep.subr.mxu0 0.0
      %1537 = vmatpush1.msra.mxu0 %v1510
      %1538 = vmatprep.subr.mxu0 0.0
      %1539 = vmatpush1.msra.mxu0 %v1509
      %1540 = vmatprep.subr.mxu0 0.0
      %1541 = vmatpush1.msra.mxu0 %v1508
      %1542 = vmatprep.subr.mxu0 0.0
      %1543 = vmatpush1.msra.mxu0 %v1507
      %1544 = vmatprep.subr.mxu0 0.0
      %1545 = vmatpush1.msra.mxu0 %v1506
      %1546 = vmatprep.subr.mxu0 0.0
      %1547 = vmatpush1.msra.mxu0 %v1505
      %1548 = vmatprep.subr.mxu0 0.0
      %1549 = vmatpush2.msra.mxu0 0.0
      %1550 = vmatprep.subr.mxu0 0.0
      %1551 = vmatpush2.msra.mxu0 0.0
      %1552 = vmatprep.subr.mxu0 0.0
      %1553 = vmatpush2.msra.mxu0 0.0
      %1554 = vmatprep.subr.mxu0 0.0
      %1555 = vmatpush2.msra.mxu0 0.0
      %1556 = vmatprep.subr.mxu0 0.0
      %1557 = vmatpush2.msra.mxu0 0.0
      %1558 = vmatprep.subr.mxu0 0.0
      %1559 = vmatpush2.msra.mxu0 0.0
      %1560 = vmatprep.subr.mxu0 0.0
      %1561 = vmatpush2.msra.mxu0 0.0
      %1562 = vmatprep.subr.mxu0 0.0
      %1563 = vmatpush2.msra.mxu0 0.0
      %1564 = vmatprep.subr.mxu0 0.0
      %1565 = vmatpush2.msra.mxu0 0.0
      %1566 = vmatprep.subr.mxu0 0.0
      %1567 = vmatpush2.msra.mxu0 0.0
      %1568 = vmatprep.subr.mxu0 0.0
      %1569 = vmatpush2.msra.mxu0 0.0
      %1570 = vmatprep.subr.mxu0 0.0
      %1571 = vmatpush2.msra.mxu0 0.0
      %1572 = vmatprep.subr.mxu0 0.0
      %1573 = vmatpush2.msra.mxu0 0.0
      %1574 = vmatprep.subr.mxu0 0.0
      %1575 = vmatpush2.msra.mxu0 0.0
      %1576 = vmatprep.subr.mxu0 0.0
      %1577 = vmatpush2.msra.mxu0 0.0
      %1578 = vmatprep.subr.mxu0 0.0
      %1579 = vmatpush2.msra.mxu0 0.0
      %1580 = vmatprep.mubr.f32.mxu0 0.0
      %1581 = vmatmul.mubr.f32.gmra.mxu0 %v1514
      %v1582 = vpop.f32.mrf.mxu0
      %v1583 = vadd.f32 %v176, %v1582
      %v1584 = vpop.f32.mrf.mxu0
      %1585 = vdwg.mxu0
      %1586 = vst [vmem:[%s165] sm:$0xff] %v1583
      %p1587 = scmp.lt.s32.totalorder %s14, 1
      %s1588 = scalar_select %p1587, %s14, 1
      %s1589 = smul.addr %s1588, 8
      %s1590 = scalar_lea.vmem %s3, %s1589
      // Predicated region
      $region33: #{transformer_forward.1} parent=31 // pred_check
        %p1591 = pneg %p100
      $region34: #{transformer_forward.1} parent=31 // pred_check_branch
        %1593 = sbr.rel (%p1591) target = $region36
      $region35: #{transformer_forward.1} parent=31 // pred_region
        _
      $region36: #{transformer_forward.1} parent=31 // pred_fallthru
        _
    $region32: #{transformer_forward.1} parent=5 // pred_fallthru
      _
    %p1594 = scmp.le.s32.totalorder 2, %s9
    // Predicated region
    $region37: #{transformer_forward.1} parent=5 // pred_check
      %p1595 = pneg %p1594
    $region38: #{transformer_forward.1} parent=5 // pred_check_branch
      %1597 = sbr.rel (%p1595) target = $region40
    $region39: #{transformer_forward.1} parent=5 // pred_region
      %s1598 = ssub.s32 %s9, 2
      // Predicated region
      $region41: #{transformer_forward.1} parent=39 // pred_check
        %p1599 = pneg %p106
      $region42: #{transformer_forward.1} parent=39 // pred_check_branch
        %1601 = sbr.rel (%p1599) target = $region44
      $region43: #{transformer_forward.1} parent=39 // pred_region
        %p1602 = scmp.lt.s32.totalorder %s15, 1
        %s1603 = scalar_select %p1602, %s15, 1
        %s1604 = smul.addr %s1603, 8
        %s1605 = scalar_lea.vmem %s3, %s1604
      $region44: #{transformer_forward.1} parent=39 // pred_fallthru
        _
    $region40: #{transformer_forward.1} parent=5 // pred_fallthru
      _
  $region6: #{transformer_forward.1} parent=0 // loop_footer
    %s13 = sadd.s32 1, %s9
  $region7: #{transformer_forward.1} parent=0 // loop_footer_branch
    %8 = sbr.rel target = $region3
  $region8: #{transformer_forward.1} parent=0 // loop_exit
    _

</llo_original>
